<compile_context>
chip_gen: v5e
topology: v5e:2x2
jax: 0.10.0
libtpu: 0.0.40
codegen_flags: <defaults>
</compile_context>

<pallas_src>
import jax
import jax.numpy as jnp
from jax.experimental import pallas as pl
from jax.experimental.pallas import tpu as pltpu

LANE = 128


def _round_up(x, m):
    return ((x + m - 1) // m) * m


def _pick_tb(B):
    """Batch-tile rows: <= 128 (vreg pressure / VMEM), shrunk until the grid has
    >= 4 steps when the batch allows it (pipelining + both TCs on v7x)."""
    TB = min(128, _round_up(B, 8))
    while TB > 8 and pl.cdiv(B, TB) < 4:
        TB = max(8, _round_up(TB // 2, 8))
    return TB


# ----------------------------- Pallas kernel --------------------------------

def _make_drqn_kernel(with_state: bool):
    def kernel(obs_ref, h0_ref,
               wr_ref, br_ref,          # representation: obs -> state (Linear + ReLU)
               wih_ref, bih_ref,        # GRU input->gates (r|z|n); b_hr/b_hz folded in
               whh_ref, bhhn_ref,       # GRU hidden->gates; bhhn = b_hn only
               wq_ref, bq_ref,          # Q head: H -> action_dim
               *outs):
        if with_state:
            state_ref, q_ref, hn_ref, hseq_ref = outs
        else:
            q_ref, hn_ref, hseq_ref = outs

        T, TB, OBS_P = obs_ref.shape
        SP = wr_ref.shape[1]
        HP = whh_ref.shape[0]
        AP = wq_ref.shape[1]
        mxu_dtype = wr_ref.dtype

        # --- representation over all (t, b) rows at once: Linear + ReLU ---
        x2d = obs_ref[...].reshape(T * TB, OBS_P)
        s2d = jnp.dot(x2d, wr_ref[...], preferred_element_type=jnp.float32) + br_ref[...]
        s2d = jnp.maximum(s2d, 0.0)                          # (T*TB, SP) f32
        if with_state:
            state_ref[...] = s2d.reshape(T, TB, SP).astype(state_ref.dtype)

        # --- GRU input-side gate projections for every timestep: one big MXU op ---
        gx_all = (jnp.dot(s2d.astype(mxu_dtype), wih_ref[...],
                          preferred_element_type=jnp.float32) + bih_ref[...])
        gx_all = gx_all.reshape(T, TB, 3 * HP)               # time-major contiguous slabs

        # --- recurrence: only the h-dependent matmul + gate math stay in the loop ---
        bhh_n = jnp.broadcast_to(bhhn_ref[...], (TB, HP))    # hoisted (JAX won't CSE it)
        h = h0_ref[...].astype(jnp.float32)                  # (TB, HP)
        for t in range(T):                                   # T small & static -> unrolled
            gx = gx_all[t]                                   # contiguous (TB, 3*HP)
            gh = jnp.dot(h.astype(mxu_dtype), whh_ref[...],
                         preferred_element_type=jnp.float32)
            r = jax.nn.sigmoid(gx[:, :HP] + gh[:, :HP])
            z = jax.nn.sigmoid(gx[:, HP:2 * HP] + gh[:, HP:2 * HP])
            n = jnp.tanh(gx[:, 2 * HP:] + r * (gh[:, 2 * HP:] + bhh_n))
            h = n + z * (h - n)                              # == (1 - z) * n + z * h
            hseq_ref[t] = h                                  # contiguous VMEM scratch store
        hn_ref[...] = h.astype(hn_ref.dtype)

        # --- Q head hoisted out of the recurrence: one (T*TB, HP) x (HP, AP) matmul ---
        h_all = hseq_ref[...].reshape(T * TB, HP).astype(mxu_dtype)
        q2d = jnp.dot(h_all, wq_ref[...], preferred_element_type=jnp.float32) + bq_ref[...]
        q_ref[...] = q2d.reshape(T, TB, AP).astype(q_ref.dtype)   # single lane-dense store
    return kernel


# ------------------------------ host wrapper ---------------------------------

def _pad2(w, rows, cols, dtype=None):
    dtype = w.dtype if dtype is None else dtype
    return jnp.zeros((rows, cols), dtype).at[:w.shape[0], :w.shape[1]].set(w.astype(dtype))


def _pad_gate_cols(w, rows_p, H, HP, dtype):
    """Pad (rows, 3H) gate-stacked params to (rows_p, 3*HP), per gate block (r|z|n)."""
    parts = [_pad2(w[:, g * H:(g + 1) * H], rows_p, HP, dtype) for g in range(3)]
    return jnp.concatenate(parts, axis=1)


def drqn_forward(obs, h0, params, *, with_state=True, mxu_dtype=jnp.bfloat16):
    """DRQNPolicy.forward (GRU, single recurrent layer).

    obs: (B, T, obs_dim) f32; h0: (1, B, H) f32 (PyTorch (layers, B, H) layout).
    Returns (outputs, argmax_action, evalQ, (hidden_states, cell_states)).
    """
    B, T, obs_dim = obs.shape
    state_dim = params["wr"].shape[1]
    H = params["whh"].shape[0]
    A = params["wq"].shape[1]

    OBS_P = _round_up(obs_dim, LANE)
    SP = _round_up(state_dim, LANE)
    HP = _round_up(H, LANE)
    AP = _round_up(A, LANE)

    TB = _pick_tb(B)
    B_pad = _round_up(B, TB)

    # time-major, zero-padded, lane-dense operands (bf16 MXU operands by default).
    # Zero padding is exact here: padded state lanes stay 0 through ReLU, padded
    # hidden lanes stay 0 through the GRU (h0 / gate cols / biases are 0-padded),
    # padded Q lanes are sliced off before argmax.
    obs_tm = jnp.transpose(obs, (1, 0, 2)).astype(mxu_dtype)
    obs_p = jnp.zeros((T, B_pad, OBS_P), mxu_dtype).at[:, :B, :obs_dim].set(obs_tm)
    h0_p = jnp.zeros((B_pad, HP), jnp.float32).at[:B, :H].set(h0[0])

    wr = _pad2(params["wr"], OBS_P, SP, mxu_dtype)
    br = _pad2(params["br"], 1, SP, jnp.float32)
    wih = _pad_gate_cols(params["wih"], SP, H, HP, mxu_dtype)
    # fold b_hr / b_hz into b_ir / b_iz (added unconditionally); keep b_hn separate
    bih_fold = params["bih"].at[:, :2 * H].add(params["bhh"][:, :2 * H])
    bih = _pad_gate_cols(bih_fold, 1, H, HP, jnp.float32)
    whh = _pad_gate_cols(params["whh"], HP, H, HP, mxu_dtype)
    bhh_n = _pad2(params["bhh"][:, 2 * H:], 1, HP, jnp.float32)
    wq = _pad2(params["wq"], HP, AP, mxu_dtype)
    bq = _pad2(params["bq"], 1, AP, jnp.float32)

    resident = lambda i: (0, 0)                               # weights: same block always
    batch_tile3 = lambda bs: pl.BlockSpec(bs, lambda i: (0, i, 0))

    out_shape, out_specs = [], []
    if with_state:
        out_shape.append(jax.ShapeDtypeStruct((T, B_pad, SP), jnp.float32))
        out_specs.append(batch_tile3((T, TB, SP)))
    out_shape += [jax.ShapeDtypeStruct((T, B_pad, AP), jnp.float32),
                  jax.ShapeDtypeStruct((B_pad, HP), jnp.float32)]
    out_specs += [batch_tile3((T, TB, AP)),
                  pl.BlockSpec((TB, HP), lambda i: (i, 0))]

    outs = pl.pallas_call(
        _make_drqn_kernel(with_state),
        out_shape=tuple(out_shape),
        grid=(B_pad // TB,),
        in_specs=[
            batch_tile3((T, TB, OBS_P)),                 # obs tile (time-major)
            pl.BlockSpec((TB, HP), lambda i: (i, 0)),    # h0 tile
            pl.BlockSpec((OBS_P, SP), resident),         # wr
            pl.BlockSpec((1, SP), resident),             # br
            pl.BlockSpec((SP, 3 * HP), resident),        # wih
            pl.BlockSpec((1, 3 * HP), resident),         # bih (b_hr/b_hz folded in)
            pl.BlockSpec((HP, 3 * HP), resident),        # whh
            pl.BlockSpec((1, HP), resident),             # b_hn only
            pl.BlockSpec((HP, AP), resident),            # wq
            pl.BlockSpec((1, AP), resident),             # bq
        ],
        out_specs=tuple(out_specs),
        scratch_shapes=[pltpu.VMEM((T, TB, HP), jnp.float32)],   # per-step h history
        compiler_params=pltpu.CompilerParams(
            dimension_semantics=("parallel",),       # batch tiles shard across TCs (v7x)
            vmem_limit_bytes=48 * 1024 * 1024),      # explicit budget, safe under 64 MiB
    )(obs_p, h0_p, wr, br, wih, bih, whh, bhh_n, wq, bq)

    if with_state:
        state_tm, q_tm, hn_p = outs
        state = jnp.transpose(state_tm[:, :B, :state_dim], (1, 0, 2))
    else:
        q_tm, hn_p = outs
        state = None
    evalQ = jnp.transpose(q_tm[:, :B, :A], (1, 0, 2))
    hidden_states = hn_p[:B, :H][None]               # (recurrent_layer_N=1, B, H)
    argmax_action = jnp.argmax(evalQ[:, -1], axis=-1)

    outputs = {"state": state}
    cell_states = None                               # GRU path (lstm=False)
    return outputs, argmax_action, evalQ, (hidden_states, cell_states)


# ------------------------- deterministic parameters -------------------------

def make_params(key, obs_dim, state_dim, hidden, action_dim):
    """Synthetic weights following DRQNPolicy: Basic_MLP repr + GRU + linear Q head."""
    ks = jax.random.split(key, 4)

    def lin(k, din, dout):
        kw, kb = jax.random.split(k)
        scale = 1.0 / jnp.sqrt(jnp.float32(din))
        w = jax.random.uniform(kw, (din, dout), jnp.float32, -scale, scale)
        b = jax.random.uniform(kb, (1, dout), jnp.float32, -scale, scale)
        return w, b

    wr, br = lin(ks[0], obs_dim, state_dim)           # Basic_MLP layer (Linear+ReLU)
    wih, bih = lin(ks[1], state_dim, 3 * hidden)      # GRU W_ih / b_ih  (r|z|n)
    whh, bhh = lin(ks[2], hidden, 3 * hidden)         # GRU W_hh / b_hh  (r|z|n)
    wq, bq = lin(ks[3], hidden, action_dim)           # Q head
    return dict(wr=wr, br=br, wih=wih, bih=bih, whh=whh, bhh=bhh, wq=wq, bq=bq)


def reference_forward(obs, h0, p):
    """Pure-JAX f32 reference (PyTorch GRU equations, gate order r, z, n)."""
    s = jnp.maximum(jnp.einsum('btd,dh->bth', obs, p["wr"]) + p["br"], 0.0)
    H = p["whh"].shape[0]
    h = h0[0]
    qs = []
    for t in range(obs.shape[1]):
        gx = s[:, t, :] @ p["wih"] + p["bih"]
        gh = h @ p["whh"] + p["bhh"]
        r = jax.nn.sigmoid(gx[:, :H] + gh[:, :H])
        z = jax.nn.sigmoid(gx[:, H:2 * H] + gh[:, H:2 * H])
        n = jnp.tanh(gx[:, 2 * H:] + r * gh[:, 2 * H:])
        h = (1.0 - z) * n + z * h
        qs.append(h @ p["wq"] + p["bq"])
    evalQ = jnp.stack(qs, axis=1)
    argmax_action = jnp.argmax(evalQ[:, -1], axis=-1)
    return s, argmax_action, evalQ, h[None]


# ----------------------------------- main ------------------------------------

if __name__ == "__main__":
    # small shapes consistent with DRQNPolicy: (batch, seq, obs_dim) observations,
    # GRU hidden 32, Discrete(4) actions, recurrent_layer_N = 1
    B, T = 8, 8
    OBS_DIM, STATE_DIM, RNN_HIDDEN, ACTION_DIM = 16, 32, 32, 4

    key = jax.random.PRNGKey(0)
    k_obs, k_par = jax.random.split(key)
    obs = jax.random.normal(k_obs, (B, T, OBS_DIM), dtype=jnp.float32)
    params = make_params(k_par, OBS_DIM, STATE_DIM, RNN_HIDDEN, ACTION_DIM)

    # init_hidden(batch): zeros of shape (recurrent_layer_N, B, H); GRU -> no cell state
    h0 = jnp.zeros((1, B, RNN_HIDDEN), jnp.float32)

    ref_s, ref_arg, ref_q, ref_h = reference_forward(obs, h0, params)

    # --- exactness check: f32 MXU operands ---
    o32, arg32, q32, (h32, c32) = drqn_forward(obs, h0, params, mxu_dtype=jnp.float32)
    jax.block_until_ready((o32["state"], arg32, q32, h32))
    assert o32["state"].shape == (B, T, STATE_DIM)
    assert q32.shape == (B, T, ACTION_DIM)
    assert h32.shape == (1, B, RNN_HIDDEN) and c32 is None
    assert jnp.allclose(o32["state"], ref_s, atol=2e-4, rtol=2e-4)
    assert jnp.allclose(q32, ref_q, atol=2e-4, rtol=2e-4)
    assert jnp.allclose(h32, ref_h, atol=2e-4, rtol=2e-4)
    assert jnp.array_equal(arg32, ref_arg)

    # --- perf path: bf16 MXU operands (default), f32 accumulation & gate math ---
    outputs, argmax_action, evalQ, (hidden_states, cell_states) = drqn_forward(obs, h0, params)
    jax.block_until_ready((outputs["state"], argmax_action, evalQ, hidden_states))
    assert cell_states is None
    assert jnp.allclose(outputs["state"], ref_s, atol=5e-2, rtol=5e-2)
    assert jnp.allclose(evalQ, ref_q, atol=5e-2, rtol=5e-2)
    assert jnp.allclose(hidden_states, ref_h, atol=5e-2, rtol=5e-2)
    # greedy action must be (near-)optimal under the f32 reference Q (robust to bf16 ties)
    q_last = ref_q[:, -1]
    chosen = jnp.take_along_axis(q_last, argmax_action[:, None], axis=-1)[:, 0]
    assert bool(jnp.all(q_last.max(axis=-1) - chosen <= 1e-1))
    assert jnp.array_equal(argmax_action, jnp.argmax(evalQ[:, -1], axis=-1))

    # TODO(synk): LSTM branch (rnn == 'LSTM', cell-state carry), recurrent_layer_N > 1,
    # Basic_CNN representation branch, target()/copy_target() (same kernel applied to
    # target params) and DistributedDataParallel are training/config plumbing not
    # covered by this fused forward kernel.

    print("KERNEL_OK")
</pallas_src>

<mosaic_0001>
module attributes {stable_mosaic.version = 11 : i64} {
  func.func @kernel(%arg0: i32, %arg1: memref<8x8x128xf32, #tpu.memory_space<vmem>>, %arg2: memref<8x128xf32, #tpu.memory_space<vmem>>, %arg3: memref<128x128xf32, #tpu.memory_space<vmem>>, %arg4: memref<1x128xf32, #tpu.memory_space<vmem>>, %arg5: memref<128x384xf32, #tpu.memory_space<vmem>>, %arg6: memref<1x384xf32, #tpu.memory_space<vmem>>, %arg7: memref<128x384xf32, #tpu.memory_space<vmem>>, %arg8: memref<1x128xf32, #tpu.memory_space<vmem>>, %arg9: memref<128x128xf32, #tpu.memory_space<vmem>>, %arg10: memref<1x128xf32, #tpu.memory_space<vmem>>, %arg11: memref<8x8x128xf32, #tpu.memory_space<vmem>>, %arg12: memref<8x8x128xf32, #tpu.memory_space<vmem>>, %arg13: memref<8x128xf32, #tpu.memory_space<vmem>>, %arg14: memref<8x8x128xf32, #tpu.memory_space<vmem>>) attributes {dimension_semantics = [#tpu.dimension_semantics<parallel>], iteration_bounds = array<i64: 1>, scalar_prefetch = 0 : i64, scratch_operands = 1 : i64, tpu.core_type = #tpu.core_type<tc>, window_params = [{transform_indices = @transform_0, window_bounds = array<i64: 8, 8, 128>}, {transform_indices = @transform_1, window_bounds = array<i64: 8, 128>}, {pipeline_mode = #tpu.pipeline_mode<synchronous>, transform_indices = @transform_2, window_bounds = array<i64: 128, 128>}, {pipeline_mode = #tpu.pipeline_mode<synchronous>, transform_indices = @transform_3, window_bounds = array<i64: 1, 128>}, {pipeline_mode = #tpu.pipeline_mode<synchronous>, transform_indices = @transform_4, window_bounds = array<i64: 128, 384>}, {pipeline_mode = #tpu.pipeline_mode<synchronous>, transform_indices = @transform_5, window_bounds = array<i64: 1, 384>}, {pipeline_mode = #tpu.pipeline_mode<synchronous>, transform_indices = @transform_6, window_bounds = array<i64: 128, 384>}, {pipeline_mode = #tpu.pipeline_mode<synchronous>, transform_indices = @transform_7, window_bounds = array<i64: 1, 128>}, {pipeline_mode = #tpu.pipeline_mode<synchronous>, transform_indices = @transform_8, window_bounds = array<i64: 128, 128>}, {pipeline_mode = #tpu.pipeline_mode<synchronous>, transform_indices = @transform_9, window_bounds = array<i64: 1, 128>}, {transform_indices = @transform_10, window_bounds = array<i64: 8, 8, 128>}, {transform_indices = @transform_11, window_bounds = array<i64: 8, 8, 128>}, {transform_indices = @transform_12, window_bounds = array<i64: 8, 128>}]} {
    %c0 = arith.constant 0 : index
    %c0_0 = arith.constant 0 : index
    %c0_1 = arith.constant 0 : index
    %0 = vector.load %arg1[%c0, %c0_0, %c0_1] : memref<8x8x128xf32, #tpu.memory_space<vmem>>, vector<8x8x128xf32>
    %1 = vector.shape_cast %0 : vector<8x8x128xf32> to vector<64x128xf32>
    %c0_2 = arith.constant 0 : index
    %c0_3 = arith.constant 0 : index
    %2 = vector.load %arg3[%c0_2, %c0_3] : memref<128x128xf32, #tpu.memory_space<vmem>>, vector<128x128xf32>
    %cst = arith.constant dense<0.000000e+00> : vector<64x128xf32>
    %3 = tpu.matmul %1, %2, %cst {dimension_numbers = #tpu.dot_dimension_numbers<[1], [0], [0], [1], [0, 0, 1, 1], [], []>} : vector<64x128xf32>, vector<128x128xf32>, vector<64x128xf32> -> vector<64x128xf32>
    %c0_4 = arith.constant 0 : index
    %c0_5 = arith.constant 0 : index
    %4 = vector.load %arg4[%c0_4, %c0_5] : memref<1x128xf32, #tpu.memory_space<vmem>>, vector<1x128xf32>
    %5 = vector.broadcast %4 : vector<1x128xf32> to vector<64x128xf32>
    %6 = arith.addf %3, %5 : vector<64x128xf32>
    %cst_6 = arith.constant 0.000000e+00 : f32
    %7 = vector.broadcast %cst_6 : f32 to vector<64x128xf32>
    %8 = arith.maximumf %6, %7 : vector<64x128xf32>
    %9 = vector.shape_cast %8 : vector<64x128xf32> to vector<8x8x128xf32>
    %c0_7 = arith.constant 0 : index
    %c0_8 = arith.constant 0 : index
    %c0_9 = arith.constant 0 : index
    %10 = vector.load %arg11[%c0_7, %c0_8, %c0_9] : memref<8x8x128xf32, #tpu.memory_space<vmem>>, vector<8x8x128xf32>
    tpu.vector_store %arg11[%c0_7, %c0_8, %c0_9], %9 {strides = array<i32>} : memref<8x8x128xf32, #tpu.memory_space<vmem>>, vector<8x8x128xf32>,
    %c0_10 = arith.constant 0 : index
    %c0_11 = arith.constant 0 : index
    %11 = vector.load %arg5[%c0_10, %c0_11] : memref<128x384xf32, #tpu.memory_space<vmem>>, vector<128x384xf32>
    %cst_12 = arith.constant dense<0.000000e+00> : vector<64x384xf32>
    %12 = tpu.matmul %8, %11, %cst_12 {dimension_numbers = #tpu.dot_dimension_numbers<[1], [0], [0], [1], [0, 0, 1, 1], [], []>} : vector<64x128xf32>, vector<128x384xf32>, vector<64x384xf32> -> vector<64x384xf32>
    %c0_13 = arith.constant 0 : index
    %c0_14 = arith.constant 0 : index
    %13 = vector.load %arg6[%c0_13, %c0_14] : memref<1x384xf32, #tpu.memory_space<vmem>>, vector<1x384xf32>
    %14 = vector.broadcast %13 : vector<1x384xf32> to vector<64x384xf32>
    %15 = arith.addf %12, %14 : vector<64x384xf32>
    %16 = vector.shape_cast %15 : vector<64x384xf32> to vector<8x8x384xf32>
    %c0_15 = arith.constant 0 : index
    %c0_16 = arith.constant 0 : index
    %17 = vector.load %arg8[%c0_15, %c0_16] : memref<1x128xf32, #tpu.memory_space<vmem>>, vector<1x128xf32>
    %18 = vector.shape_cast %17 : vector<1x128xf32> to vector<1x128xf32>
    %19 = vector.broadcast %18 : vector<1x128xf32> to vector<8x128xf32>
    %c0_17 = arith.constant 0 : index
    %c0_18 = arith.constant 0 : index
    %20 = vector.load %arg2[%c0_17, %c0_18] : memref<8x128xf32, #tpu.memory_space<vmem>>, vector<8x128xf32>
    %21 = vector.extract_strided_slice %16 {offsets = [0, 0, 0], sizes = [1, 8, 384], strides = [1, 1, 1]} : vector<8x8x384xf32> to vector<1x8x384xf32>
    %22 = vector.shape_cast %21 : vector<1x8x384xf32> to vector<8x384xf32>
    %c0_19 = arith.constant 0 : index
    %c0_20 = arith.constant 0 : index
    %23 = vector.load %arg7[%c0_19, %c0_20] : memref<128x384xf32, #tpu.memory_space<vmem>>, vector<128x384xf32>
    %cst_21 = arith.constant dense<0.000000e+00> : vector<8x384xf32>
    %24 = tpu.matmul %20, %23, %cst_21 {dimension_numbers = #tpu.dot_dimension_numbers<[1], [0], [0], [1], [0, 0, 1, 1], [], []>} : vector<8x128xf32>, vector<128x384xf32>, vector<8x384xf32> -> vector<8x384xf32>
    %25 = vector.extract_strided_slice %22 {offsets = [0, 0], sizes = [8, 128], strides = [1, 1]} : vector<8x384xf32> to vector<8x128xf32>
    %26 = vector.extract_strided_slice %24 {offsets = [0, 0], sizes = [8, 128], strides = [1, 1]} : vector<8x384xf32> to vector<8x128xf32>
    %27 = arith.addf %25, %26 : vector<8x128xf32>
    %28 = arith.negf %27 : vector<8x128xf32>
    %29 = math.exp %28 : vector<8x128xf32>
    %cst_22 = arith.constant 1.000000e+00 : f32
    %30 = vector.broadcast %cst_22 : f32 to vector<8x128xf32>
    %31 = arith.addf %30, %29 : vector<8x128xf32>
    %32 = arith.divf %30, %31 : vector<8x128xf32>
    %33 = vector.extract_strided_slice %22 {offsets = [0, 128], sizes = [8, 128], strides = [1, 1]} : vector<8x384xf32> to vector<8x128xf32>
    %34 = vector.extract_strided_slice %24 {offsets = [0, 128], sizes = [8, 128], strides = [1, 1]} : vector<8x384xf32> to vector<8x128xf32>
    %35 = arith.addf %33, %34 : vector<8x128xf32>
    %36 = arith.negf %35 : vector<8x128xf32>
    %37 = math.exp %36 : vector<8x128xf32>
    %cst_23 = arith.constant 1.000000e+00 : f32
    %38 = vector.broadcast %cst_23 : f32 to vector<8x128xf32>
    %39 = arith.addf %38, %37 : vector<8x128xf32>
    %40 = arith.divf %38, %39 : vector<8x128xf32>
    %41 = vector.extract_strided_slice %22 {offsets = [0, 256], sizes = [8, 128], strides = [1, 1]} : vector<8x384xf32> to vector<8x128xf32>
    %42 = vector.extract_strided_slice %24 {offsets = [0, 256], sizes = [8, 128], strides = [1, 1]} : vector<8x384xf32> to vector<8x128xf32>
    %43 = arith.addf %42, %19 : vector<8x128xf32>
    %44 = arith.mulf %32, %43 : vector<8x128xf32>
    %45 = arith.addf %41, %44 : vector<8x128xf32>
    %46 = math.tanh %45 : vector<8x128xf32>
    %47 = arith.subf %20, %46 : vector<8x128xf32>
    %48 = arith.mulf %40, %47 : vector<8x128xf32>
    %49 = arith.addf %46, %48 : vector<8x128xf32>
    %c0_24 = arith.constant 0 : index
    %c0_25 = arith.constant 0 : index
    %c0_26 = arith.constant 0 : index
    %50 = vector.load %arg14[%c0_24, %c0_25, %c0_26] : memref<8x8x128xf32, #tpu.memory_space<vmem>>, vector<1x8x128xf32>
    %51 = vector.shape_cast %50 : vector<1x8x128xf32> to vector<8x128xf32>
    %52 = vector.shape_cast %49 : vector<8x128xf32> to vector<1x8x128xf32>
    tpu.vector_store %arg14[%c0_24, %c0_25, %c0_26], %52 {strides = array<i32>} : memref<8x8x128xf32, #tpu.memory_space<vmem>>, vector<1x8x128xf32>,
    %53 = vector.extract_strided_slice %16 {offsets = [1, 0, 0], sizes = [1, 8, 384], strides = [1, 1, 1]} : vector<8x8x384xf32> to vector<1x8x384xf32>
    %54 = vector.shape_cast %53 : vector<1x8x384xf32> to vector<8x384xf32>
    %c0_27 = arith.constant 0 : index
    %c0_28 = arith.constant 0 : index
    %55 = vector.load %arg7[%c0_27, %c0_28] : memref<128x384xf32, #tpu.memory_space<vmem>>, vector<128x384xf32>
    %cst_29 = arith.constant dense<0.000000e+00> : vector<8x384xf32>
    %56 = tpu.matmul %49, %55, %cst_29 {dimension_numbers = #tpu.dot_dimension_numbers<[1], [0], [0], [1], [0, 0, 1, 1], [], []>} : vector<8x128xf32>, vector<128x384xf32>, vector<8x384xf32> -> vector<8x384xf32>
    %57 = vector.extract_strided_slice %54 {offsets = [0, 0], sizes = [8, 128], strides = [1, 1]} : vector<8x384xf32> to vector<8x128xf32>
    %58 = vector.extract_strided_slice %56 {offsets = [0, 0], sizes = [8, 128], strides = [1, 1]} : vector<8x384xf32> to vector<8x128xf32>
    %59 = arith.addf %57, %58 : vector<8x128xf32>
    %60 = arith.negf %59 : vector<8x128xf32>
    %61 = math.exp %60 : vector<8x128xf32>
    %cst_30 = arith.constant 1.000000e+00 : f32
    %62 = vector.broadcast %cst_30 : f32 to vector<8x128xf32>
    %63 = arith.addf %62, %61 : vector<8x128xf32>
    %64 = arith.divf %62, %63 : vector<8x128xf32>
    %65 = vector.extract_strided_slice %54 {offsets = [0, 128], sizes = [8, 128], strides = [1, 1]} : vector<8x384xf32> to vector<8x128xf32>
    %66 = vector.extract_strided_slice %56 {offsets = [0, 128], sizes = [8, 128], strides = [1, 1]} : vector<8x384xf32> to vector<8x128xf32>
    %67 = arith.addf %65, %66 : vector<8x128xf32>
    %68 = arith.negf %67 : vector<8x128xf32>
    %69 = math.exp %68 : vector<8x128xf32>
    %cst_31 = arith.constant 1.000000e+00 : f32
    %70 = vector.broadcast %cst_31 : f32 to vector<8x128xf32>
    %71 = arith.addf %70, %69 : vector<8x128xf32>
    %72 = arith.divf %70, %71 : vector<8x128xf32>
    %73 = vector.extract_strided_slice %54 {offsets = [0, 256], sizes = [8, 128], strides = [1, 1]} : vector<8x384xf32> to vector<8x128xf32>
    %74 = vector.extract_strided_slice %56 {offsets = [0, 256], sizes = [8, 128], strides = [1, 1]} : vector<8x384xf32> to vector<8x128xf32>
    %75 = arith.addf %74, %19 : vector<8x128xf32>
    %76 = arith.mulf %64, %75 : vector<8x128xf32>
    %77 = arith.addf %73, %76 : vector<8x128xf32>
    %78 = math.tanh %77 : vector<8x128xf32>
    %79 = arith.subf %49, %78 : vector<8x128xf32>
    %80 = arith.mulf %72, %79 : vector<8x128xf32>
    %81 = arith.addf %78, %80 : vector<8x128xf32>
    %c1 = arith.constant 1 : index
    %c0_32 = arith.constant 0 : index
    %c0_33 = arith.constant 0 : index
    %82 = vector.load %arg14[%c1, %c0_32, %c0_33] : memref<8x8x128xf32, #tpu.memory_space<vmem>>, vector<1x8x128xf32>
    %83 = vector.shape_cast %82 : vector<1x8x128xf32> to vector<8x128xf32>
    %84 = vector.shape_cast %81 : vector<8x128xf32> to vector<1x8x128xf32>
    tpu.vector_store %arg14[%c1, %c0_32, %c0_33], %84 {strides = array<i32>} : memref<8x8x128xf32, #tpu.memory_space<vmem>>, vector<1x8x128xf32>,
    %85 = vector.extract_strided_slice %16 {offsets = [2, 0, 0], sizes = [1, 8, 384], strides = [1, 1, 1]} : vector<8x8x384xf32> to vector<1x8x384xf32>
    %86 = vector.shape_cast %85 : vector<1x8x384xf32> to vector<8x384xf32>
    %c0_34 = arith.constant 0 : index
    %c0_35 = arith.constant 0 : index
    %87 = vector.load %arg7[%c0_34, %c0_35] : memref<128x384xf32, #tpu.memory_space<vmem>>, vector<128x384xf32>
    %cst_36 = arith.constant dense<0.000000e+00> : vector<8x384xf32>
    %88 = tpu.matmul %81, %87, %cst_36 {dimension_numbers = #tpu.dot_dimension_numbers<[1], [0], [0], [1], [0, 0, 1, 1], [], []>} : vector<8x128xf32>, vector<128x384xf32>, vector<8x384xf32> -> vector<8x384xf32>
    %89 = vector.extract_strided_slice %86 {offsets = [0, 0], sizes = [8, 128], strides = [1, 1]} : vector<8x384xf32> to vector<8x128xf32>
    %90 = vector.extract_strided_slice %88 {offsets = [0, 0], sizes = [8, 128], strides = [1, 1]} : vector<8x384xf32> to vector<8x128xf32>
    %91 = arith.addf %89, %90 : vector<8x128xf32>
    %92 = arith.negf %91 : vector<8x128xf32>
    %93 = math.exp %92 : vector<8x128xf32>
    %cst_37 = arith.constant 1.000000e+00 : f32
    %94 = vector.broadcast %cst_37 : f32 to vector<8x128xf32>
    %95 = arith.addf %94, %93 : vector<8x128xf32>
    %96 = arith.divf %94, %95 : vector<8x128xf32>
    %97 = vector.extract_strided_slice %86 {offsets = [0, 128], sizes = [8, 128], strides = [1, 1]} : vector<8x384xf32> to vector<8x128xf32>
    %98 = vector.extract_strided_slice %88 {offsets = [0, 128], sizes = [8, 128], strides = [1, 1]} : vector<8x384xf32> to vector<8x128xf32>
    %99 = arith.addf %97, %98 : vector<8x128xf32>
    %100 = arith.negf %99 : vector<8x128xf32>
    %101 = math.exp %100 : vector<8x128xf32>
    %cst_38 = arith.constant 1.000000e+00 : f32
    %102 = vector.broadcast %cst_38 : f32 to vector<8x128xf32>
    %103 = arith.addf %102, %101 : vector<8x128xf32>
    %104 = arith.divf %102, %103 : vector<8x128xf32>
    %105 = vector.extract_strided_slice %86 {offsets = [0, 256], sizes = [8, 128], strides = [1, 1]} : vector<8x384xf32> to vector<8x128xf32>
    %106 = vector.extract_strided_slice %88 {offsets = [0, 256], sizes = [8, 128], strides = [1, 1]} : vector<8x384xf32> to vector<8x128xf32>
    %107 = arith.addf %106, %19 : vector<8x128xf32>
    %108 = arith.mulf %96, %107 : vector<8x128xf32>
    %109 = arith.addf %105, %108 : vector<8x128xf32>
    %110 = math.tanh %109 : vector<8x128xf32>
    %111 = arith.subf %81, %110 : vector<8x128xf32>
    %112 = arith.mulf %104, %111 : vector<8x128xf32>
    %113 = arith.addf %110, %112 : vector<8x128xf32>
    %c2 = arith.constant 2 : index
    %c0_39 = arith.constant 0 : index
    %c0_40 = arith.constant 0 : index
    %114 = vector.load %arg14[%c2, %c0_39, %c0_40] : memref<8x8x128xf32, #tpu.memory_space<vmem>>, vector<1x8x128xf32>
    %115 = vector.shape_cast %114 : vector<1x8x128xf32> to vector<8x128xf32>
    %116 = vector.shape_cast %113 : vector<8x128xf32> to vector<1x8x128xf32>
    tpu.vector_store %arg14[%c2, %c0_39, %c0_40], %116 {strides = array<i32>} : memref<8x8x128xf32, #tpu.memory_space<vmem>>, vector<1x8x128xf32>,
    %117 = vector.extract_strided_slice %16 {offsets = [3, 0, 0], sizes = [1, 8, 384], strides = [1, 1, 1]} : vector<8x8x384xf32> to vector<1x8x384xf32>
    %118 = vector.shape_cast %117 : vector<1x8x384xf32> to vector<8x384xf32>
    %c0_41 = arith.constant 0 : index
    %c0_42 = arith.constant 0 : index
    %119 = vector.load %arg7[%c0_41, %c0_42] : memref<128x384xf32, #tpu.memory_space<vmem>>, vector<128x384xf32>
    %cst_43 = arith.constant dense<0.000000e+00> : vector<8x384xf32>
    %120 = tpu.matmul %113, %119, %cst_43 {dimension_numbers = #tpu.dot_dimension_numbers<[1], [0], [0], [1], [0, 0, 1, 1], [], []>} : vector<8x128xf32>, vector<128x384xf32>, vector<8x384xf32> -> vector<8x384xf32>
    %121 = vector.extract_strided_slice %118 {offsets = [0, 0], sizes = [8, 128], strides = [1, 1]} : vector<8x384xf32> to vector<8x128xf32>
    %122 = vector.extract_strided_slice %120 {offsets = [0, 0], sizes = [8, 128], strides = [1, 1]} : vector<8x384xf32> to vector<8x128xf32>
    %123 = arith.addf %121, %122 : vector<8x128xf32>
    %124 = arith.negf %123 : vector<8x128xf32>
    %125 = math.exp %124 : vector<8x128xf32>
    %cst_44 = arith.constant 1.000000e+00 : f32
    %126 = vector.broadcast %cst_44 : f32 to vector<8x128xf32>
    %127 = arith.addf %126, %125 : vector<8x128xf32>
    %128 = arith.divf %126, %127 : vector<8x128xf32>
    %129 = vector.extract_strided_slice %118 {offsets = [0, 128], sizes = [8, 128], strides = [1, 1]} : vector<8x384xf32> to vector<8x128xf32>
    %130 = vector.extract_strided_slice %120 {offsets = [0, 128], sizes = [8, 128], strides = [1, 1]} : vector<8x384xf32> to vector<8x128xf32>
    %131 = arith.addf %129, %130 : vector<8x128xf32>
    %132 = arith.negf %131 : vector<8x128xf32>
    %133 = math.exp %132 : vector<8x128xf32>
    %cst_45 = arith.constant 1.000000e+00 : f32
    %134 = vector.broadcast %cst_45 : f32 to vector<8x128xf32>
    %135 = arith.addf %134, %133 : vector<8x128xf32>
    %136 = arith.divf %134, %135 : vector<8x128xf32>
    %137 = vector.extract_strided_slice %118 {offsets = [0, 256], sizes = [8, 128], strides = [1, 1]} : vector<8x384xf32> to vector<8x128xf32>
    %138 = vector.extract_strided_slice %120 {offsets = [0, 256], sizes = [8, 128], strides = [1, 1]} : vector<8x384xf32> to vector<8x128xf32>
    %139 = arith.addf %138, %19 : vector<8x128xf32>
    %140 = arith.mulf %128, %139 : vector<8x128xf32>
    %141 = arith.addf %137, %140 : vector<8x128xf32>
    %142 = math.tanh %141 : vector<8x128xf32>
    %143 = arith.subf %113, %142 : vector<8x128xf32>
    %144 = arith.mulf %136, %143 : vector<8x128xf32>
    %145 = arith.addf %142, %144 : vector<8x128xf32>
    %c3 = arith.constant 3 : index
    %c0_46 = arith.constant 0 : index
    %c0_47 = arith.constant 0 : index
    %146 = vector.load %arg14[%c3, %c0_46, %c0_47] : memref<8x8x128xf32, #tpu.memory_space<vmem>>, vector<1x8x128xf32>
    %147 = vector.shape_cast %146 : vector<1x8x128xf32> to vector<8x128xf32>
    %148 = vector.shape_cast %145 : vector<8x128xf32> to vector<1x8x128xf32>
    tpu.vector_store %arg14[%c3, %c0_46, %c0_47], %148 {strides = array<i32>} : memref<8x8x128xf32, #tpu.memory_space<vmem>>, vector<1x8x128xf32>,
    %149 = vector.extract_strided_slice %16 {offsets = [4, 0, 0], sizes = [1, 8, 384], strides = [1, 1, 1]} : vector<8x8x384xf32> to vector<1x8x384xf32>
    %150 = vector.shape_cast %149 : vector<1x8x384xf32> to vector<8x384xf32>
    %c0_48 = arith.constant 0 : index
    %c0_49 = arith.constant 0 : index
    %151 = vector.load %arg7[%c0_48, %c0_49] : memref<128x384xf32, #tpu.memory_space<vmem>>, vector<128x384xf32>
    %cst_50 = arith.constant dense<0.000000e+00> : vector<8x384xf32>
    %152 = tpu.matmul %145, %151, %cst_50 {dimension_numbers = #tpu.dot_dimension_numbers<[1], [0], [0], [1], [0, 0, 1, 1], [], []>} : vector<8x128xf32>, vector<128x384xf32>, vector<8x384xf32> -> vector<8x384xf32>
    %153 = vector.extract_strided_slice %150 {offsets = [0, 0], sizes = [8, 128], strides = [1, 1]} : vector<8x384xf32> to vector<8x128xf32>
    %154 = vector.extract_strided_slice %152 {offsets = [0, 0], sizes = [8, 128], strides = [1, 1]} : vector<8x384xf32> to vector<8x128xf32>
    %155 = arith.addf %153, %154 : vector<8x128xf32>
    %156 = arith.negf %155 : vector<8x128xf32>
    %157 = math.exp %156 : vector<8x128xf32>
    %cst_51 = arith.constant 1.000000e+00 : f32
    %158 = vector.broadcast %cst_51 : f32 to vector<8x128xf32>
    %159 = arith.addf %158, %157 : vector<8x128xf32>
    %160 = arith.divf %158, %159 : vector<8x128xf32>
    %161 = vector.extract_strided_slice %150 {offsets = [0, 128], sizes = [8, 128], strides = [1, 1]} : vector<8x384xf32> to vector<8x128xf32>
    %162 = vector.extract_strided_slice %152 {offsets = [0, 128], sizes = [8, 128], strides = [1, 1]} : vector<8x384xf32> to vector<8x128xf32>
    %163 = arith.addf %161, %162 : vector<8x128xf32>
    %164 = arith.negf %163 : vector<8x128xf32>
    %165 = math.exp %164 : vector<8x128xf32>
    %cst_52 = arith.constant 1.000000e+00 : f32
    %166 = vector.broadcast %cst_52 : f32 to vector<8x128xf32>
    %167 = arith.addf %166, %165 : vector<8x128xf32>
    %168 = arith.divf %166, %167 : vector<8x128xf32>
    %169 = vector.extract_strided_slice %150 {offsets = [0, 256], sizes = [8, 128], strides = [1, 1]} : vector<8x384xf32> to vector<8x128xf32>
    %170 = vector.extract_strided_slice %152 {offsets = [0, 256], sizes = [8, 128], strides = [1, 1]} : vector<8x384xf32> to vector<8x128xf32>
    %171 = arith.addf %170, %19 : vector<8x128xf32>
    %172 = arith.mulf %160, %171 : vector<8x128xf32>
    %173 = arith.addf %169, %172 : vector<8x128xf32>
    %174 = math.tanh %173 : vector<8x128xf32>
    %175 = arith.subf %145, %174 : vector<8x128xf32>
    %176 = arith.mulf %168, %175 : vector<8x128xf32>
    %177 = arith.addf %174, %176 : vector<8x128xf32>
    %c4 = arith.constant 4 : index
    %c0_53 = arith.constant 0 : index
    %c0_54 = arith.constant 0 : index
    %178 = vector.load %arg14[%c4, %c0_53, %c0_54] : memref<8x8x128xf32, #tpu.memory_space<vmem>>, vector<1x8x128xf32>
    %179 = vector.shape_cast %178 : vector<1x8x128xf32> to vector<8x128xf32>
    %180 = vector.shape_cast %177 : vector<8x128xf32> to vector<1x8x128xf32>
    tpu.vector_store %arg14[%c4, %c0_53, %c0_54], %180 {strides = array<i32>} : memref<8x8x128xf32, #tpu.memory_space<vmem>>, vector<1x8x128xf32>,
    %181 = vector.extract_strided_slice %16 {offsets = [5, 0, 0], sizes = [1, 8, 384], strides = [1, 1, 1]} : vector<8x8x384xf32> to vector<1x8x384xf32>
    %182 = vector.shape_cast %181 : vector<1x8x384xf32> to vector<8x384xf32>
    %c0_55 = arith.constant 0 : index
    %c0_56 = arith.constant 0 : index
    %183 = vector.load %arg7[%c0_55, %c0_56] : memref<128x384xf32, #tpu.memory_space<vmem>>, vector<128x384xf32>
    %cst_57 = arith.constant dense<0.000000e+00> : vector<8x384xf32>
    %184 = tpu.matmul %177, %183, %cst_57 {dimension_numbers = #tpu.dot_dimension_numbers<[1], [0], [0], [1], [0, 0, 1, 1], [], []>} : vector<8x128xf32>, vector<128x384xf32>, vector<8x384xf32> -> vector<8x384xf32>
    %185 = vector.extract_strided_slice %182 {offsets = [0, 0], sizes = [8, 128], strides = [1, 1]} : vector<8x384xf32> to vector<8x128xf32>
    %186 = vector.extract_strided_slice %184 {offsets = [0, 0], sizes = [8, 128], strides = [1, 1]} : vector<8x384xf32> to vector<8x128xf32>
    %187 = arith.addf %185, %186 : vector<8x128xf32>
    %188 = arith.negf %187 : vector<8x128xf32>
    %189 = math.exp %188 : vector<8x128xf32>
    %cst_58 = arith.constant 1.000000e+00 : f32
    %190 = vector.broadcast %cst_58 : f32 to vector<8x128xf32>
    %191 = arith.addf %190, %189 : vector<8x128xf32>
    %192 = arith.divf %190, %191 : vector<8x128xf32>
    %193 = vector.extract_strided_slice %182 {offsets = [0, 128], sizes = [8, 128], strides = [1, 1]} : vector<8x384xf32> to vector<8x128xf32>
    %194 = vector.extract_strided_slice %184 {offsets = [0, 128], sizes = [8, 128], strides = [1, 1]} : vector<8x384xf32> to vector<8x128xf32>
    %195 = arith.addf %193, %194 : vector<8x128xf32>
    %196 = arith.negf %195 : vector<8x128xf32>
    %197 = math.exp %196 : vector<8x128xf32>
    %cst_59 = arith.constant 1.000000e+00 : f32
    %198 = vector.broadcast %cst_59 : f32 to vector<8x128xf32>
    %199 = arith.addf %198, %197 : vector<8x128xf32>
    %200 = arith.divf %198, %199 : vector<8x128xf32>
    %201 = vector.extract_strided_slice %182 {offsets = [0, 256], sizes = [8, 128], strides = [1, 1]} : vector<8x384xf32> to vector<8x128xf32>
    %202 = vector.extract_strided_slice %184 {offsets = [0, 256], sizes = [8, 128], strides = [1, 1]} : vector<8x384xf32> to vector<8x128xf32>
    %203 = arith.addf %202, %19 : vector<8x128xf32>
    %204 = arith.mulf %192, %203 : vector<8x128xf32>
    %205 = arith.addf %201, %204 : vector<8x128xf32>
    %206 = math.tanh %205 : vector<8x128xf32>
    %207 = arith.subf %177, %206 : vector<8x128xf32>
    %208 = arith.mulf %200, %207 : vector<8x128xf32>
    %209 = arith.addf %206, %208 : vector<8x128xf32>
    %c5 = arith.constant 5 : index
    %c0_60 = arith.constant 0 : index
    %c0_61 = arith.constant 0 : index
    %210 = vector.load %arg14[%c5, %c0_60, %c0_61] : memref<8x8x128xf32, #tpu.memory_space<vmem>>, vector<1x8x128xf32>
    %211 = vector.shape_cast %210 : vector<1x8x128xf32> to vector<8x128xf32>
    %212 = vector.shape_cast %209 : vector<8x128xf32> to vector<1x8x128xf32>
    tpu.vector_store %arg14[%c5, %c0_60, %c0_61], %212 {strides = array<i32>} : memref<8x8x128xf32, #tpu.memory_space<vmem>>, vector<1x8x128xf32>,
    %213 = vector.extract_strided_slice %16 {offsets = [6, 0, 0], sizes = [1, 8, 384], strides = [1, 1, 1]} : vector<8x8x384xf32> to vector<1x8x384xf32>
    %214 = vector.shape_cast %213 : vector<1x8x384xf32> to vector<8x384xf32>
    %c0_62 = arith.constant 0 : index
    %c0_63 = arith.constant 0 : index
    %215 = vector.load %arg7[%c0_62, %c0_63] : memref<128x384xf32, #tpu.memory_space<vmem>>, vector<128x384xf32>
    %cst_64 = arith.constant dense<0.000000e+00> : vector<8x384xf32>
    %216 = tpu.matmul %209, %215, %cst_64 {dimension_numbers = #tpu.dot_dimension_numbers<[1], [0], [0], [1], [0, 0, 1, 1], [], []>} : vector<8x128xf32>, vector<128x384xf32>, vector<8x384xf32> -> vector<8x384xf32>
    %217 = vector.extract_strided_slice %214 {offsets = [0, 0], sizes = [8, 128], strides = [1, 1]} : vector<8x384xf32> to vector<8x128xf32>
    %218 = vector.extract_strided_slice %216 {offsets = [0, 0], sizes = [8, 128], strides = [1, 1]} : vector<8x384xf32> to vector<8x128xf32>
    %219 = arith.addf %217, %218 : vector<8x128xf32>
    %220 = arith.negf %219 : vector<8x128xf32>
    %221 = math.exp %220 : vector<8x128xf32>
    %cst_65 = arith.constant 1.000000e+00 : f32
    %222 = vector.broadcast %cst_65 : f32 to vector<8x128xf32>
    %223 = arith.addf %222, %221 : vector<8x128xf32>
    %224 = arith.divf %222, %223 : vector<8x128xf32>
    %225 = vector.extract_strided_slice %214 {offsets = [0, 128], sizes = [8, 128], strides = [1, 1]} : vector<8x384xf32> to vector<8x128xf32>
    %226 = vector.extract_strided_slice %216 {offsets = [0, 128], sizes = [8, 128], strides = [1, 1]} : vector<8x384xf32> to vector<8x128xf32>
    %227 = arith.addf %225, %226 : vector<8x128xf32>
    %228 = arith.negf %227 : vector<8x128xf32>
    %229 = math.exp %228 : vector<8x128xf32>
    %cst_66 = arith.constant 1.000000e+00 : f32
    %230 = vector.broadcast %cst_66 : f32 to vector<8x128xf32>
    %231 = arith.addf %230, %229 : vector<8x128xf32>
    %232 = arith.divf %230, %231 : vector<8x128xf32>
    %233 = vector.extract_strided_slice %214 {offsets = [0, 256], sizes = [8, 128], strides = [1, 1]} : vector<8x384xf32> to vector<8x128xf32>
    %234 = vector.extract_strided_slice %216 {offsets = [0, 256], sizes = [8, 128], strides = [1, 1]} : vector<8x384xf32> to vector<8x128xf32>
    %235 = arith.addf %234, %19 : vector<8x128xf32>
    %236 = arith.mulf %224, %235 : vector<8x128xf32>
    %237 = arith.addf %233, %236 : vector<8x128xf32>
    %238 = math.tanh %237 : vector<8x128xf32>
    %239 = arith.subf %209, %238 : vector<8x128xf32>
    %240 = arith.mulf %232, %239 : vector<8x128xf32>
    %241 = arith.addf %238, %240 : vector<8x128xf32>
    %c6 = arith.constant 6 : index
    %c0_67 = arith.constant 0 : index
    %c0_68 = arith.constant 0 : index
    %242 = vector.load %arg14[%c6, %c0_67, %c0_68] : memref<8x8x128xf32, #tpu.memory_space<vmem>>, vector<1x8x128xf32>
    %243 = vector.shape_cast %242 : vector<1x8x128xf32> to vector<8x128xf32>
    %244 = vector.shape_cast %241 : vector<8x128xf32> to vector<1x8x128xf32>
    tpu.vector_store %arg14[%c6, %c0_67, %c0_68], %244 {strides = array<i32>} : memref<8x8x128xf32, #tpu.memory_space<vmem>>, vector<1x8x128xf32>,
    %245 = vector.extract_strided_slice %16 {offsets = [7, 0, 0], sizes = [1, 8, 384], strides = [1, 1, 1]} : vector<8x8x384xf32> to vector<1x8x384xf32>
    %246 = vector.shape_cast %245 : vector<1x8x384xf32> to vector<8x384xf32>
    %c0_69 = arith.constant 0 : index
    %c0_70 = arith.constant 0 : index
    %247 = vector.load %arg7[%c0_69, %c0_70] : memref<128x384xf32, #tpu.memory_space<vmem>>, vector<128x384xf32>
    %cst_71 = arith.constant dense<0.000000e+00> : vector<8x384xf32>
    %248 = tpu.matmul %241, %247, %cst_71 {dimension_numbers = #tpu.dot_dimension_numbers<[1], [0], [0], [1], [0, 0, 1, 1], [], []>} : vector<8x128xf32>, vector<128x384xf32>, vector<8x384xf32> -> vector<8x384xf32>
    %249 = vector.extract_strided_slice %246 {offsets = [0, 0], sizes = [8, 128], strides = [1, 1]} : vector<8x384xf32> to vector<8x128xf32>
    %250 = vector.extract_strided_slice %248 {offsets = [0, 0], sizes = [8, 128], strides = [1, 1]} : vector<8x384xf32> to vector<8x128xf32>
    %251 = arith.addf %249, %250 : vector<8x128xf32>
    %252 = arith.negf %251 : vector<8x128xf32>
    %253 = math.exp %252 : vector<8x128xf32>
    %cst_72 = arith.constant 1.000000e+00 : f32
    %254 = vector.broadcast %cst_72 : f32 to vector<8x128xf32>
    %255 = arith.addf %254, %253 : vector<8x128xf32>
    %256 = arith.divf %254, %255 : vector<8x128xf32>
    %257 = vector.extract_strided_slice %246 {offsets = [0, 128], sizes = [8, 128], strides = [1, 1]} : vector<8x384xf32> to vector<8x128xf32>
    %258 = vector.extract_strided_slice %248 {offsets = [0, 128], sizes = [8, 128], strides = [1, 1]} : vector<8x384xf32> to vector<8x128xf32>
    %259 = arith.addf %257, %258 : vector<8x128xf32>
    %260 = arith.negf %259 : vector<8x128xf32>
    %261 = math.exp %260 : vector<8x128xf32>
    %cst_73 = arith.constant 1.000000e+00 : f32
    %262 = vector.broadcast %cst_73 : f32 to vector<8x128xf32>
    %263 = arith.addf %262, %261 : vector<8x128xf32>
    %264 = arith.divf %262, %263 : vector<8x128xf32>
    %265 = vector.extract_strided_slice %246 {offsets = [0, 256], sizes = [8, 128], strides = [1, 1]} : vector<8x384xf32> to vector<8x128xf32>
    %266 = vector.extract_strided_slice %248 {offsets = [0, 256], sizes = [8, 128], strides = [1, 1]} : vector<8x384xf32> to vector<8x128xf32>
    %267 = arith.addf %266, %19 : vector<8x128xf32>
    %268 = arith.mulf %256, %267 : vector<8x128xf32>
    %269 = arith.addf %265, %268 : vector<8x128xf32>
    %270 = math.tanh %269 : vector<8x128xf32>
    %271 = arith.subf %241, %270 : vector<8x128xf32>
    %272 = arith.mulf %264, %271 : vector<8x128xf32>
    %273 = arith.addf %270, %272 : vector<8x128xf32>
    %c7 = arith.constant 7 : index
    %c0_74 = arith.constant 0 : index
    %c0_75 = arith.constant 0 : index
    %274 = vector.load %arg14[%c7, %c0_74, %c0_75] : memref<8x8x128xf32, #tpu.memory_space<vmem>>, vector<1x8x128xf32>
    %275 = vector.shape_cast %274 : vector<1x8x128xf32> to vector<8x128xf32>
    %276 = vector.shape_cast %273 : vector<8x128xf32> to vector<1x8x128xf32>
    tpu.vector_store %arg14[%c7, %c0_74, %c0_75], %276 {strides = array<i32>} : memref<8x8x128xf32, #tpu.memory_space<vmem>>, vector<1x8x128xf32>,
    %c0_76 = arith.constant 0 : index
    %c0_77 = arith.constant 0 : index
    %277 = vector.load %arg13[%c0_76, %c0_77] : memref<8x128xf32, #tpu.memory_space<vmem>>, vector<8x128xf32>
    tpu.vector_store %arg13[%c0_76, %c0_77], %273 {strides = array<i32>} : memref<8x128xf32, #tpu.memory_space<vmem>>, vector<8x128xf32>,
    %c0_78 = arith.constant 0 : index
    %c0_79 = arith.constant 0 : index
    %c0_80 = arith.constant 0 : index
    %278 = vector.load %arg14[%c0_78, %c0_79, %c0_80] : memref<8x8x128xf32, #tpu.memory_space<vmem>>, vector<8x8x128xf32>
    %279 = vector.shape_cast %278 : vector<8x8x128xf32> to vector<64x128xf32>
    %c0_81 = arith.constant 0 : index
    %c0_82 = arith.constant 0 : index
    %280 = vector.load %arg9[%c0_81, %c0_82] : memref<128x128xf32, #tpu.memory_space<vmem>>, vector<128x128xf32>
    %cst_83 = arith.constant dense<0.000000e+00> : vector<64x128xf32>
    %281 = tpu.matmul %279, %280, %cst_83 {dimension_numbers = #tpu.dot_dimension_numbers<[1], [0], [0], [1], [0, 0, 1, 1], [], []>} : vector<64x128xf32>, vector<128x128xf32>, vector<64x128xf32> -> vector<64x128xf32>
    %c0_84 = arith.constant 0 : index
    %c0_85 = arith.constant 0 : index
    %282 = vector.load %arg10[%c0_84, %c0_85] : memref<1x128xf32, #tpu.memory_space<vmem>>, vector<1x128xf32>
    %283 = vector.broadcast %282 : vector<1x128xf32> to vector<64x128xf32>
    %284 = arith.addf %281, %283 : vector<64x128xf32>
    %285 = vector.shape_cast %284 : vector<64x128xf32> to vector<8x8x128xf32>
    %c0_86 = arith.constant 0 : index
    %c0_87 = arith.constant 0 : index
    %c0_88 = arith.constant 0 : index
    %286 = vector.load %arg12[%c0_86, %c0_87, %c0_88] : memref<8x8x128xf32, #tpu.memory_space<vmem>>, vector<8x8x128xf32>
    tpu.vector_store %arg12[%c0_86, %c0_87, %c0_88], %285 {strides = array<i32>} : memref<8x8x128xf32, #tpu.memory_space<vmem>>, vector<8x8x128xf32>,
    return
  }
  func.func @transform_0(%arg0: i32) -> (i32, i32, i32) {
    %c0_i32 = arith.constant 0 : i32
    %c0_i32_0 = arith.constant 0 : i32
    %c0_i32_1 = arith.constant 0 : i32
    return %c0_i32, %arg0, %c0_i32_0 : i32, i32, i32
  }
  func.func @transform_1(%arg0: i32) -> (i32, i32) {
    %c0_i32 = arith.constant 0 : i32
    %c0_i32_0 = arith.constant 0 : i32
    return %arg0, %c0_i32 : i32, i32
  }
  func.func @transform_2(%arg0: i32) -> (i32, i32) {
    %c0_i32 = arith.constant 0 : i32
    %c0_i32_0 = arith.constant 0 : i32
    %c0_i32_1 = arith.constant 0 : i32
    return %c0_i32, %c0_i32_0 : i32, i32
  }
  func.func @transform_3(%arg0: i32) -> (i32, i32) {
    %c0_i32 = arith.constant 0 : i32
    %c0_i32_0 = arith.constant 0 : i32
    %c0_i32_1 = arith.constant 0 : i32
    return %c0_i32, %c0_i32_0 : i32, i32
  }
  func.func @transform_4(%arg0: i32) -> (i32, i32) {
    %c0_i32 = arith.constant 0 : i32
    %c0_i32_0 = arith.constant 0 : i32
    %c0_i32_1 = arith.constant 0 : i32
    return %c0_i32, %c0_i32_0 : i32, i32
  }
  func.func @transform_5(%arg0: i32) -> (i32, i32) {
    %c0_i32 = arith.constant 0 : i32
    %c0_i32_0 = arith.constant 0 : i32
    %c0_i32_1 = arith.constant 0 : i32
    return %c0_i32, %c0_i32_0 : i32, i32
  }
  func.func @transform_6(%arg0: i32) -> (i32, i32) {
    %c0_i32 = arith.constant 0 : i32
    %c0_i32_0 = arith.constant 0 : i32
    %c0_i32_1 = arith.constant 0 : i32
    return %c0_i32, %c0_i32_0 : i32, i32
  }
  func.func @transform_7(%arg0: i32) -> (i32, i32) {
    %c0_i32 = arith.constant 0 : i32
    %c0_i32_0 = arith.constant 0 : i32
    %c0_i32_1 = arith.constant 0 : i32
    return %c0_i32, %c0_i32_0 : i32, i32
  }
  func.func @transform_8(%arg0: i32) -> (i32, i32) {
    %c0_i32 = arith.constant 0 : i32
    %c0_i32_0 = arith.constant 0 : i32
    %c0_i32_1 = arith.constant 0 : i32
    return %c0_i32, %c0_i32_0 : i32, i32
  }
  func.func @transform_9(%arg0: i32) -> (i32, i32) {
    %c0_i32 = arith.constant 0 : i32
    %c0_i32_0 = arith.constant 0 : i32
    %c0_i32_1 = arith.constant 0 : i32
    return %c0_i32, %c0_i32_0 : i32, i32
  }
  func.func @transform_10(%arg0: i32) -> (i32, i32, i32) {
    %c0_i32 = arith.constant 0 : i32
    %c0_i32_0 = arith.constant 0 : i32
    %c0_i32_1 = arith.constant 0 : i32
    return %c0_i32, %arg0, %c0_i32_0 : i32, i32, i32
  }
  func.func @transform_11(%arg0: i32) -> (i32, i32, i32) {
    %c0_i32 = arith.constant 0 : i32
    %c0_i32_0 = arith.constant 0 : i32
    %c0_i32_1 = arith.constant 0 : i32
    return %c0_i32, %arg0, %c0_i32_0 : i32, i32, i32
  }
  func.func @transform_12(%arg0: i32) -> (i32, i32) {
    %c0_i32 = arith.constant 0 : i32
    %c0_i32_0 = arith.constant 0 : i32
    return %arg0, %c0_i32 : i32, i32
  }
}

</mosaic_0001>

<llo_original>
// kernel: tpu_custom_call.1
$region0: #{tpu_custom_call.1}
  #allocation0 [shape = 'u32[]', space=smem, size = 0x4, offset = 0x4, fixed_abs, tag = 'smem constant byte address 0x4 - core index']
  #allocation1 [shape = 'u32[72,128]{1,0:T(1,128)}', space=vmem, size = 0x9000, scoped, tag = 'internal scratch']
  #allocation2 [shape = 'f32[8,8,128]{2,1,0:T(8,128)}', space=vmem, size = 0x8000, scoped, tag = 'scratch operand']
  %s0 = inlined_call_operand.hbm [shape: f32[8,8,128], index: 0, kind: input, shape index: {}]
  %s1 = inlined_call_operand.hbm [shape: f32[8,128], index: 1, kind: input, shape index: {}]
  %s2 = inlined_call_operand.hbm [shape: f32[128,128], index: 2, kind: input, shape index: {}]
  %s3 = inlined_call_operand.vmem [shape: f32[1,128], index: 3, kind: input, shape index: {}]
  %s4 = inlined_call_operand.hbm [shape: f32[128,384], index: 4, kind: input, shape index: {}]
  %s5 = inlined_call_operand.vmem [shape: f32[1,384], index: 5, kind: input, shape index: {}]
  %s6 = inlined_call_operand.hbm [shape: f32[128,384], index: 6, kind: input, shape index: {}]
  %s7 = inlined_call_operand.vmem [shape: f32[1,128], index: 7, kind: input, shape index: {}]
  %s8 = inlined_call_operand.hbm [shape: f32[128,128], index: 8, kind: input, shape index: {}]
  %s9 = inlined_call_operand.vmem [shape: f32[1,128], index: 9, kind: input, shape index: {}]
  %s10 = inlined_call_operand.hbm [shape: f32[8,8,128], index: 10, kind: output, shape index: {0}]
  %s11 = inlined_call_operand.hbm [shape: f32[8,8,128], index: 11, kind: output, shape index: {1}]
  %s12 = inlined_call_operand.hbm [shape: f32[8,128], index: 12, kind: output, shape index: {2}]
  %13 = xla_tuple %s10, %s11, %s12
  %s14 = sld [smem:[#allocation0]]
  $region90: #{tpu_custom_call.1} parent=0
    _
  %s16 = ssub.s32 1, %s14
  %s17 = scalar_select 0, %s16, %s14
  $region1: #{tpu_custom_call.1} parent=0
    #allocation3 [shape = 'u8[32768]{0}', space=vmem, size = 0x8000, scoped, tag = 'input window, operand 0, single buffered']
    #allocation4 [shape = 's32[1]{0}', space=sflag, size = 0x4, scoped, tag = 'scoped memory for tpu_custom_call.1']
    #allocation5 [shape = 's32[1]{0}', space=sflag, size = 0x4, scoped, tag = 'scoped memory for tpu_custom_call.1']
    #allocation6 [shape = 'u8[4096]{0}', space=vmem, size = 0x1000, scoped, tag = 'input window, operand 1, single buffered']
    #allocation7 [shape = 's32[1]{0}', space=sflag, size = 0x4, scoped, tag = 'scoped memory for tpu_custom_call.1']
    #allocation8 [shape = 'u8[65536]{0}', space=vmem, size = 0x10000, scoped, tag = 'input window, operand 2, single buffered']
    #allocation9 [shape = 'u8[196608]{0}', space=vmem, size = 0x30000, scoped, tag = 'input window, operand 4, single buffered']
    #allocation10 [shape = 's32[1]{0}', space=sflag, size = 0x4, scoped, tag = 'scoped memory for tpu_custom_call.1']
    #allocation11 [shape = 'u8[196608]{0}', space=vmem, size = 0x30000, scoped, tag = 'input window, operand 6, single buffered']
    #allocation12 [shape = 'u8[65536]{0}', space=vmem, size = 0x10000, scoped, tag = 'input window, operand 8, single buffered']
    #allocation13 [shape = 's32[1]{0}', space=sflag, size = 0x4, scoped, tag = 'scoped memory for tpu_custom_call.1']
    #allocation14 [shape = 'u8[32768]{0}', space=vmem, size = 0x8000, scoped, tag = 'output window, operand 0, single buffered']
    #allocation15 [shape = 'u8[32768]{0}', space=vmem, size = 0x8000, scoped, tag = 'output window, operand 1, single buffered']
    #allocation16 [shape = 's32[1]{0}', space=sflag, size = 0x4, scoped, tag = 'scoped memory for tpu_custom_call.1']
    #allocation17 [shape = 'u8[4096]{0}', space=vmem, size = 0x1000, scoped, tag = 'output window, operand 2, single buffered']
    %18 = vsyncpa [#allocation4], 0
    %19 = vsyncpa [#allocation7], 0
    %20 = vsyncpa [#allocation10], 0
    %21 = vsyncpa [#allocation13], 0
    %22 = vsyncpa [#allocation5], 0
    %23 = vsyncpa [#allocation16], 0
    // Predicated region
    $region2: #{tpu_custom_call.1} parent=1 // pred_check
      _
    $region3: #{tpu_custom_call.1} parent=1 // pred_check_branch
      %25 = sbr.rel (0) target = $region5
    $region4: #{tpu_custom_call.1} parent=1 // pred_region
      %27 = vsyncadd [#allocation4], 0
      %s28 = sshll.u32 %s0, 4
      %s29 = int_to_ptr.hbm [resolvable:$true] %s28
      %s30 = sshll.u32 [#allocation3], 4
      %s31 = int_to_ptr.vmem [resolvable:$true] %s30
      %36 = dma.hbm_to_vmem [thread:$0]  %s29, 1024, %s31, [#allocation4], 128, 128, 8
    $region5: #{tpu_custom_call.1} parent=1 // pred_fallthru
      _
    // Predicated region
    $region6: #{tpu_custom_call.1} parent=1 // pred_check
      _
    $region7: #{tpu_custom_call.1} parent=1 // pred_check_branch
      %38 = sbr.rel (0) target = $region9
    $region8: #{tpu_custom_call.1} parent=1 // pred_region
      %40 = vsyncadd [#allocation7], 0
      %s42 = sshll.u32 %s1, 4
      %s43 = int_to_ptr.hbm [resolvable:$true] %s42
      %s44 = sshll.u32 [#allocation6], 4
      %s45 = int_to_ptr.vmem [resolvable:$true] %s44
      %47 = dma.hbm_to_vmem [thread:$0]  %s43, 128, %s45, [#allocation7]
    $region9: #{tpu_custom_call.1} parent=1 // pred_fallthru
      _
    // Predicated region
    $region10: #{tpu_custom_call.1} parent=1 // pred_check
      _
    $region11: #{tpu_custom_call.1} parent=1 // pred_check_branch
      %49 = sbr.rel (0) target = $region13
    $region12: #{tpu_custom_call.1} parent=1 // pred_region
      %51 = vsyncadd [#allocation7], 0
      %s52 = sshll.u32 %s2, 4
      %s53 = int_to_ptr.hbm [resolvable:$true] %s52
      %s54 = sshll.u32 [#allocation8], 4
      %s55 = int_to_ptr.vmem [resolvable:$true] %s54
      %60 = dma.hbm_to_vmem [thread:$0]  %s53, 2048, %s55, [#allocation7], 128, 128, 8
    $region13: #{tpu_custom_call.1} parent=1 // pred_fallthru
      _
    // Predicated region
    $region14: #{tpu_custom_call.1} parent=1 // pred_check
      _
    $region15: #{tpu_custom_call.1} parent=1 // pred_check_branch
      %62 = sbr.rel (0) target = $region17
    $region16: #{tpu_custom_call.1} parent=1 // pred_region
      _
    $region17: #{tpu_custom_call.1} parent=1 // pred_fallthru
      _
    // Predicated region
    $region18: #{tpu_custom_call.1} parent=1 // pred_check
      _
    $region19: #{tpu_custom_call.1} parent=1 // pred_check_branch
      %64 = sbr.rel (0) target = $region21
    $region20: #{tpu_custom_call.1} parent=1 // pred_region
      %66 = vsyncadd [#allocation10], 0
      %s67 = sshll.u32 %s4, 4
      %s68 = int_to_ptr.hbm [resolvable:$true] %s67
      %s69 = sshll.u32 [#allocation9], 4
      %s70 = int_to_ptr.vmem [resolvable:$true] %s69
      %75 = dma.hbm_to_vmem [thread:$0]  %s68, 6144, %s70, [#allocation10], 384, 384, 24
    $region21: #{tpu_custom_call.1} parent=1 // pred_fallthru
      _
    // Predicated region
    $region22: #{tpu_custom_call.1} parent=1 // pred_check
      _
    $region23: #{tpu_custom_call.1} parent=1 // pred_check_branch
      %77 = sbr.rel (0) target = $region25
    $region24: #{tpu_custom_call.1} parent=1 // pred_region
      _
    $region25: #{tpu_custom_call.1} parent=1 // pred_fallthru
      _
    // Predicated region
    $region26: #{tpu_custom_call.1} parent=1 // pred_check
      _
    $region27: #{tpu_custom_call.1} parent=1 // pred_check_branch
      %79 = sbr.rel (0) target = $region29
    $region28: #{tpu_custom_call.1} parent=1 // pred_region
      %81 = vsyncadd [#allocation10], 0
      %s82 = sshll.u32 %s6, 4
      %s83 = int_to_ptr.hbm [resolvable:$true] %s82
      %s84 = sshll.u32 [#allocation11], 4
      %s85 = int_to_ptr.vmem [resolvable:$true] %s84
      %90 = dma.hbm_to_vmem [thread:$0]  %s83, 6144, %s85, [#allocation10], 384, 384, 24
    $region29: #{tpu_custom_call.1} parent=1 // pred_fallthru
      _
    // Predicated region
    $region30: #{tpu_custom_call.1} parent=1 // pred_check
      _
    $region31: #{tpu_custom_call.1} parent=1 // pred_check_branch
      %92 = sbr.rel (0) target = $region33
    $region32: #{tpu_custom_call.1} parent=1 // pred_region
      _
    $region33: #{tpu_custom_call.1} parent=1 // pred_fallthru
      _
    // Predicated region
    $region34: #{tpu_custom_call.1} parent=1 // pred_check
      _
    $region35: #{tpu_custom_call.1} parent=1 // pred_check_branch
      %94 = sbr.rel (0) target = $region37
    $region36: #{tpu_custom_call.1} parent=1 // pred_region
      %96 = vsyncadd [#allocation13], 0
      %s97 = sshll.u32 %s8, 4
      %s98 = int_to_ptr.hbm [resolvable:$true] %s97
      %s99 = sshll.u32 [#allocation12], 4
      %s100 = int_to_ptr.vmem [resolvable:$true] %s99
      %105 = dma.hbm_to_vmem [thread:$0]  %s98, 2048, %s100, [#allocation13], 128, 128, 8
    $region37: #{tpu_custom_call.1} parent=1 // pred_fallthru
      _
    // Predicated region
    $region38: #{tpu_custom_call.1} parent=1 // pred_check
      _
    $region39: #{tpu_custom_call.1} parent=1 // pred_check_branch
      %107 = sbr.rel (0) target = $region41
    $region40: #{tpu_custom_call.1} parent=1 // pred_region
      _
    $region41: #{tpu_custom_call.1} parent=1 // pred_fallthru
      _
    // Predicated region
    $region42: #{tpu_custom_call.1} parent=1 // pred_check
      _
    $region43: #{tpu_custom_call.1} parent=1 // pred_check_branch
      %109 = sbr.rel (0) target = $region45
    $region44: #{tpu_custom_call.1} parent=1 // pred_region
      %111 = dma.done [#allocation4], 1024
    $region45: #{tpu_custom_call.1} parent=1 // pred_fallthru
      _
    // Predicated region
    $region46: #{tpu_custom_call.1} parent=1 // pred_check
      _
    $region47: #{tpu_custom_call.1} parent=1 // pred_check_branch
      %113 = sbr.rel (0) target = $region49
    $region48: #{tpu_custom_call.1} parent=1 // pred_region
      %115 = dma.done [#allocation7], 128
    $region49: #{tpu_custom_call.1} parent=1 // pred_fallthru
      _
    // Predicated region
    $region50: #{tpu_custom_call.1} parent=1 // pred_check
      _
    $region51: #{tpu_custom_call.1} parent=1 // pred_check_branch
      %117 = sbr.rel (0) target = $region53
    $region52: #{tpu_custom_call.1} parent=1 // pred_region
      %119 = dma.done [#allocation7], 2048
    $region53: #{tpu_custom_call.1} parent=1 // pred_fallthru
      _
    // Predicated region
    $region54: #{tpu_custom_call.1} parent=1 // pred_check
      _
    $region55: #{tpu_custom_call.1} parent=1 // pred_check_branch
      %121 = sbr.rel (0) target = $region57
    $region56: #{tpu_custom_call.1} parent=1 // pred_region
      %123 = dma.done [#allocation10], 6144
    $region57: #{tpu_custom_call.1} parent=1 // pred_fallthru
      _
    // Predicated region
    $region58: #{tpu_custom_call.1} parent=1 // pred_check
      _
    $region59: #{tpu_custom_call.1} parent=1 // pred_check_branch
      %125 = sbr.rel (0) target = $region61
    $region60: #{tpu_custom_call.1} parent=1 // pred_region
      %127 = dma.done [#allocation10], 6144
    $region61: #{tpu_custom_call.1} parent=1 // pred_fallthru
      _
    // Predicated region
    $region62: #{tpu_custom_call.1} parent=1 // pred_check
      _
    $region63: #{tpu_custom_call.1} parent=1 // pred_check_branch
      %129 = sbr.rel (0) target = $region65
    $region64: #{tpu_custom_call.1} parent=1 // pred_region
      %131 = dma.done [#allocation13], 2048
    $region65: #{tpu_custom_call.1} parent=1 // pred_fallthru
      _
    %v132 = vld [vmem:[#allocation3] sm:$0xff]
    %v133 = vld [vmem:[#allocation3 + $0x8] sm:$0xff]
    %v134 = vld [vmem:[#allocation3 + $0x10] sm:$0xff]
    %v135 = vld [vmem:[#allocation3 + $0x18] sm:$0xff]
    %v136 = vld [vmem:[#allocation3 + $0x20] sm:$0xff]
    %v137 = vld [vmem:[#allocation3 + $0x28] sm:$0xff]
    %v138 = vld [vmem:[#allocation3 + $0x30] sm:$0xff]
    %v139 = vld [vmem:[#allocation3 + $0x38] sm:$0xff]
    %v140 = vld [vmem:[#allocation8] sm:$0xff]
    %v141 = vld [vmem:[#allocation8 + $0x8] sm:$0xff]
    %v142 = vld [vmem:[#allocation8 + $0x10] sm:$0xff]
    %v143 = vld [vmem:[#allocation8 + $0x18] sm:$0xff]
    %v144 = vld [vmem:[#allocation8 + $0x20] sm:$0xff]
    %v145 = vld [vmem:[#allocation8 + $0x28] sm:$0xff]
    %v146 = vld [vmem:[#allocation8 + $0x30] sm:$0xff]
    %v147 = vld [vmem:[#allocation8 + $0x38] sm:$0xff]
    %v148 = vld [vmem:[#allocation8 + $0x40] sm:$0xff]
    %v149 = vld [vmem:[#allocation8 + $0x48] sm:$0xff]
    %v150 = vld [vmem:[#allocation8 + $0x50] sm:$0xff]
    %v151 = vld [vmem:[#allocation8 + $0x58] sm:$0xff]
    %v152 = vld [vmem:[#allocation8 + $0x60] sm:$0xff]
    %v153 = vld [vmem:[#allocation8 + $0x68] sm:$0xff]
    %v154 = vld [vmem:[#allocation8 + $0x70] sm:$0xff]
    %v155 = vld [vmem:[#allocation8 + $0x78] sm:$0xff]
    %v156 = vld [vmem:[%s3] sm:$0x1]
    %v158 = vperm.slane %v156, 0
    %160 = vmatpush.msra.mxu0 %v155
    %161 = vmatpush.msra.mxu0 %v154
    %162 = vmatpush.msra.mxu0 %v153
    %163 = vmatpush.msra.mxu0 %v152
    %164 = vmatpush.msra.mxu0 %v151
    %165 = vmatpush.msra.mxu0 %v150
    %166 = vmatpush.msra.mxu0 %v149
    %167 = vmatpush.msra.mxu0 %v148
    %168 = vmatpush.msra.mxu0 %v147
    %169 = vmatpush.msra.mxu0 %v146
    %170 = vmatpush.msra.mxu0 %v145
    %171 = vmatpush.msra.mxu0 %v144
    %172 = vmatpush.msra.mxu0 %v143
    %173 = vmatpush.msra.mxu0 %v142
    %174 = vmatpush.msra.mxu0 %v141
    %175 = vmatpush.msra.mxu0 %v140
    %176 = vmatmul.f32.gmra.mxu0 %v132
    %v177 = vpop.f32.mrf.mxu0
    %v178 = vadd.f32 %v158, %v177
    %179 = vmatmul.f32.gmra.mxu0 %v133
    %v180 = vpop.f32.mrf.mxu0
    %v181 = vadd.f32 %v158, %v180
    %182 = vmatmul.f32.gmra.mxu0 %v134
    %v183 = vpop.f32.mrf.mxu0
    %v184 = vadd.f32 %v158, %v183
    %185 = vmatmul.f32.gmra.mxu0 %v135
    %v186 = vpop.f32.mrf.mxu0
    %v187 = vadd.f32 %v158, %v186
    %188 = vmatmul.f32.gmra.mxu0 %v136
    %v189 = vpop.f32.mrf.mxu0
    %v190 = vadd.f32 %v158, %v189
    %191 = vmatmul.f32.gmra.mxu0 %v137
    %v192 = vpop.f32.mrf.mxu0
    %v193 = vadd.f32 %v158, %v192
    %194 = vmatmul.f32.gmra.mxu0 %v138
    %v195 = vpop.f32.mrf.mxu0
    %v196 = vadd.f32 %v158, %v195
    %197 = vmatmul.f32.gmra.mxu0 %v139
    %v198 = vpop.f32.mrf.mxu0
    %v199 = vadd.f32 %v158, %v198
    %200 = vdwg.mxu0
    %v201 = vmax.f32 %v178, 0.0
    %v202 = vmax.f32 %v181, 0.0
    %v203 = vmax.f32 %v184, 0.0
    %v204 = vmax.f32 %v187, 0.0
    %v205 = vmax.f32 %v190, 0.0
    %v206 = vmax.f32 %v193, 0.0
    %v207 = vmax.f32 %v196, 0.0
    %v208 = vmax.f32 %v199, 0.0
    %209 = vst [vmem:[#allocation14] sm:$0xff] %v201
    %210 = vst [vmem:[#allocation14 + $0x8] sm:$0xff] %v202
    %211 = vst [vmem:[#allocation14 + $0x10] sm:$0xff] %v203
    %212 = vst [vmem:[#allocation14 + $0x18] sm:$0xff] %v204
    %213 = vst [vmem:[#allocation14 + $0x20] sm:$0xff] %v205
    %214 = vst [vmem:[#allocation14 + $0x28] sm:$0xff] %v206
    %215 = vst [vmem:[#allocation14 + $0x30] sm:$0xff] %v207
    %216 = vst [vmem:[#allocation14 + $0x38] sm:$0xff] %v208
    %v217 = vld [vmem:[#allocation9] sm:$0xff]
    %v218 = vld [vmem:[#allocation9 + $0x8] sm:$0xff]
    %v219 = vld [vmem:[#allocation9 + $0x10] sm:$0xff]
    %v220 = vld [vmem:[#allocation9 + $0x18] sm:$0xff]
    %v221 = vld [vmem:[#allocation9 + $0x20] sm:$0xff]
    %v222 = vld [vmem:[#allocation9 + $0x28] sm:$0xff]
    %v223 = vld [vmem:[#allocation9 + $0x30] sm:$0xff]
    %v224 = vld [vmem:[#allocation9 + $0x38] sm:$0xff]
    %v225 = vld [vmem:[#allocation9 + $0x40] sm:$0xff]
    %v226 = vld [vmem:[#allocation9 + $0x48] sm:$0xff]
    %v227 = vld [vmem:[#allocation9 + $0x50] sm:$0xff]
    %v228 = vld [vmem:[#allocation9 + $0x58] sm:$0xff]
    %v229 = vld [vmem:[#allocation9 + $0x60] sm:$0xff]
    %v230 = vld [vmem:[#allocation9 + $0x68] sm:$0xff]
    %v231 = vld [vmem:[#allocation9 + $0x70] sm:$0xff]
    %v232 = vld [vmem:[#allocation9 + $0x78] sm:$0xff]
    %v233 = vld [vmem:[#allocation9 + $0x80] sm:$0xff]
    %v234 = vld [vmem:[#allocation9 + $0x88] sm:$0xff]
    %v235 = vld [vmem:[#allocation9 + $0x90] sm:$0xff]
    %v236 = vld [vmem:[#allocation9 + $0x98] sm:$0xff]
    %v237 = vld [vmem:[#allocation9 + $0xa0] sm:$0xff]
    %v238 = vld [vmem:[#allocation9 + $0xa8] sm:$0xff]
    %v239 = vld [vmem:[#allocation9 + $0xb0] sm:$0xff]
    %v240 = vld [vmem:[#allocation9 + $0xb8] sm:$0xff]
    %v241 = vld [vmem:[#allocation9 + $0xc0] sm:$0xff]
    %v242 = vld [vmem:[#allocation9 + $0xc8] sm:$0xff]
    %v243 = vld [vmem:[#allocation9 + $0xd0] sm:$0xff]
    %v244 = vld [vmem:[#allocation9 + $0xd8] sm:$0xff]
    %v245 = vld [vmem:[#allocation9 + $0xe0] sm:$0xff]
    %v246 = vld [vmem:[#allocation9 + $0xe8] sm:$0xff]
    %v247 = vld [vmem:[#allocation9 + $0xf0] sm:$0xff]
    %v248 = vld [vmem:[#allocation9 + $0xf8] sm:$0xff]
    %v249 = vld [vmem:[#allocation9 + $0x100] sm:$0xff]
    %v250 = vld [vmem:[#allocation9 + $0x108] sm:$0xff]
    %v251 = vld [vmem:[#allocation9 + $0x110] sm:$0xff]
    %v252 = vld [vmem:[#allocation9 + $0x118] sm:$0xff]
    %v253 = vld [vmem:[#allocation9 + $0x120] sm:$0xff]
    %v254 = vld [vmem:[#allocation9 + $0x128] sm:$0xff]
    %v255 = vld [vmem:[#allocation9 + $0x130] sm:$0xff]
    %v256 = vld [vmem:[#allocation9 + $0x138] sm:$0xff]
    %v257 = vld [vmem:[#allocation9 + $0x140] sm:$0xff]
    %v258 = vld [vmem:[#allocation9 + $0x148] sm:$0xff]
    %v259 = vld [vmem:[#allocation9 + $0x150] sm:$0xff]
    %v260 = vld [vmem:[#allocation9 + $0x158] sm:$0xff]
    %v261 = vld [vmem:[#allocation9 + $0x160] sm:$0xff]
    %v262 = vld [vmem:[#allocation9 + $0x168] sm:$0xff]
    %v263 = vld [vmem:[#allocation9 + $0x170] sm:$0xff]
    %v264 = vld [vmem:[#allocation9 + $0x178] sm:$0xff]
    %v265 = vld [vmem:[%s5] sm:$0x7]
    %v267 = vperm.slane %v265, 0
    %v268 = vperm.slane %v265, 1
    %v269 = vperm.slane %v265, 2
    %273 = vmatpush.msra.mxu0 %v262
    %274 = vmatpush.msra.mxu0 %v259
    %275 = vmatpush.msra.mxu0 %v256
    %276 = vmatpush.msra.mxu0 %v253
    %277 = vmatpush.msra.mxu0 %v250
    %278 = vmatpush.msra.mxu0 %v247
    %279 = vmatpush.msra.mxu0 %v244
    %280 = vmatpush.msra.mxu0 %v241
    %281 = vmatpush.msra.mxu0 %v238
    %282 = vmatpush.msra.mxu0 %v235
    %283 = vmatpush.msra.mxu0 %v232
    %284 = vmatpush.msra.mxu0 %v229
    %285 = vmatpush.msra.mxu0 %v226
    %286 = vmatpush.msra.mxu0 %v223
    %287 = vmatpush.msra.mxu0 %v220
    %288 = vmatpush.msra.mxu0 %v217
    %289 = vmatmul.f32.gmra.mxu0 %v201
    %v290 = vpop.f32.mrf.mxu0
    %v291 = vadd.f32 %v267, %v290
    %292 = vmatmul.f32.gmra.mxu0 %v202
    %v293 = vpop.f32.mrf.mxu0
    %v294 = vadd.f32 %v267, %v293
    %295 = vmatmul.f32.gmra.mxu0 %v203
    %v296 = vpop.f32.mrf.mxu0
    %v297 = vadd.f32 %v267, %v296
    %298 = vmatmul.f32.gmra.mxu0 %v204
    %v299 = vpop.f32.mrf.mxu0
    %v300 = vadd.f32 %v267, %v299
    %301 = vmatmul.f32.gmra.mxu0 %v205
    %v302 = vpop.f32.mrf.mxu0
    %v303 = vadd.f32 %v267, %v302
    %304 = vmatmul.f32.gmra.mxu0 %v206
    %v305 = vpop.f32.mrf.mxu0
    %v306 = vadd.f32 %v267, %v305
    %307 = vmatmul.f32.gmra.mxu0 %v207
    %v308 = vpop.f32.mrf.mxu0
    %v309 = vadd.f32 %v267, %v308
    %310 = vmatmul.f32.gmra.mxu0 %v208
    %v311 = vpop.f32.mrf.mxu0
    %v312 = vadd.f32 %v267, %v311
    %313 = vdwg.mxu0
    %314 = vmatpush.msra.mxu0 %v263
    %315 = vmatpush.msra.mxu0 %v260
    %316 = vmatpush.msra.mxu0 %v257
    %317 = vmatpush.msra.mxu0 %v254
    %318 = vmatpush.msra.mxu0 %v251
    %319 = vmatpush.msra.mxu0 %v248
    %320 = vmatpush.msra.mxu0 %v245
    %321 = vmatpush.msra.mxu0 %v242
    %322 = vmatpush.msra.mxu0 %v239
    %323 = vmatpush.msra.mxu0 %v236
    %324 = vmatpush.msra.mxu0 %v233
    %325 = vmatpush.msra.mxu0 %v230
    %326 = vmatpush.msra.mxu0 %v227
    %327 = vmatpush.msra.mxu0 %v224
    %328 = vmatpush.msra.mxu0 %v221
    %329 = vmatpush.msra.mxu0 %v218
    %330 = vmatmul.f32.gmra.mxu0 %v201
    %v331 = vpop.f32.mrf.mxu0
    %v332 = vadd.f32 %v268, %v331
    %333 = vmatmul.f32.gmra.mxu0 %v202
    %v334 = vpop.f32.mrf.mxu0
    %v335 = vadd.f32 %v268, %v334
    %336 = vmatmul.f32.gmra.mxu0 %v203
    %v337 = vpop.f32.mrf.mxu0
    %v338 = vadd.f32 %v268, %v337
    %339 = vmatmul.f32.gmra.mxu0 %v204
    %v340 = vpop.f32.mrf.mxu0
    %v341 = vadd.f32 %v268, %v340
    %342 = vmatmul.f32.gmra.mxu0 %v205
    %v343 = vpop.f32.mrf.mxu0
    %v344 = vadd.f32 %v268, %v343
    %345 = vmatmul.f32.gmra.mxu0 %v206
    %v346 = vpop.f32.mrf.mxu0
    %v347 = vadd.f32 %v268, %v346
    %348 = vmatmul.f32.gmra.mxu0 %v207
    %v349 = vpop.f32.mrf.mxu0
    %v350 = vadd.f32 %v268, %v349
    %351 = vmatmul.f32.gmra.mxu0 %v208
    %v352 = vpop.f32.mrf.mxu0
    %v353 = vadd.f32 %v268, %v352
    %354 = vdwg.mxu0
    %355 = vmatpush.msra.mxu0 %v264
    %356 = vmatpush.msra.mxu0 %v261
    %357 = vmatpush.msra.mxu0 %v258
    %358 = vmatpush.msra.mxu0 %v255
    %359 = vmatpush.msra.mxu0 %v252
    %360 = vmatpush.msra.mxu0 %v249
    %361 = vmatpush.msra.mxu0 %v246
    %362 = vmatpush.msra.mxu0 %v243
    %363 = vmatpush.msra.mxu0 %v240
    %364 = vmatpush.msra.mxu0 %v237
    %365 = vmatpush.msra.mxu0 %v234
    %366 = vmatpush.msra.mxu0 %v231
    %367 = vmatpush.msra.mxu0 %v228
    %368 = vmatpush.msra.mxu0 %v225
    %369 = vmatpush.msra.mxu0 %v222
    %370 = vmatpush.msra.mxu0 %v219
    %371 = vmatmul.f32.gmra.mxu0 %v201
    %v372 = vpop.f32.mrf.mxu0
    %v373 = vadd.f32 %v269, %v372
    %374 = vmatmul.f32.gmra.mxu0 %v202
    %v375 = vpop.f32.mrf.mxu0
    %v376 = vadd.f32 %v269, %v375
    %377 = vmatmul.f32.gmra.mxu0 %v203
    %v378 = vpop.f32.mrf.mxu0
    %v379 = vadd.f32 %v269, %v378
    %380 = vmatmul.f32.gmra.mxu0 %v204
    %v381 = vpop.f32.mrf.mxu0
    %v382 = vadd.f32 %v269, %v381
    %383 = vmatmul.f32.gmra.mxu0 %v205
    %v384 = vpop.f32.mrf.mxu0
    %v385 = vadd.f32 %v269, %v384
    %386 = vmatmul.f32.gmra.mxu0 %v206
    %v387 = vpop.f32.mrf.mxu0
    %v388 = vadd.f32 %v269, %v387
    %389 = vmatmul.f32.gmra.mxu0 %v207
    %v390 = vpop.f32.mrf.mxu0
    %v391 = vadd.f32 %v269, %v390
    %392 = vmatmul.f32.gmra.mxu0 %v208
    %v393 = vpop.f32.mrf.mxu0
    %v394 = vadd.f32 %v269, %v393
    %395 = vdwg.mxu0
    %v396 = vld [vmem:[%s7] sm:$0x1]
    %v398 = vperm.slane %v396, 0
    %v400 = vld [vmem:[#allocation6] sm:$0xff]
    %v401 = vld [vmem:[#allocation11] sm:$0xff]
    %v402 = vld [vmem:[#allocation11 + $0x8] sm:$0xff]
    %v403 = vld [vmem:[#allocation11 + $0x10] sm:$0xff]
    %v404 = vld [vmem:[#allocation11 + $0x18] sm:$0xff]
    %v405 = vld [vmem:[#allocation11 + $0x20] sm:$0xff]
    %v406 = vld [vmem:[#allocation11 + $0x28] sm:$0xff]
    %v407 = vld [vmem:[#allocation11 + $0x30] sm:$0xff]
    %v408 = vld [vmem:[#allocation11 + $0x38] sm:$0xff]
    %v409 = vld [vmem:[#allocation11 + $0x40] sm:$0xff]
    %v410 = vld [vmem:[#allocation11 + $0x48] sm:$0xff]
    %v411 = vld [vmem:[#allocation11 + $0x50] sm:$0xff]
    %v412 = vld [vmem:[#allocation11 + $0x58] sm:$0xff]
    %v413 = vld [vmem:[#allocation11 + $0x60] sm:$0xff]
    %v414 = vld [vmem:[#allocation11 + $0x68] sm:$0xff]
    %v415 = vld [vmem:[#allocation11 + $0x70] sm:$0xff]
    %v416 = vld [vmem:[#allocation11 + $0x78] sm:$0xff]
    %v417 = vld [vmem:[#allocation11 + $0x80] sm:$0xff]
    %v418 = vld [vmem:[#allocation11 + $0x88] sm:$0xff]
    %v419 = vld [vmem:[#allocation11 + $0x90] sm:$0xff]
    %v420 = vld [vmem:[#allocation11 + $0x98] sm:$0xff]
    %v421 = vld [vmem:[#allocation11 + $0xa0] sm:$0xff]
    %v422 = vld [vmem:[#allocation11 + $0xa8] sm:$0xff]
    %v423 = vld [vmem:[#allocation11 + $0xb0] sm:$0xff]
    %v424 = vld [vmem:[#allocation11 + $0xb8] sm:$0xff]
    %v425 = vld [vmem:[#allocation11 + $0xc0] sm:$0xff]
    %v426 = vld [vmem:[#allocation11 + $0xc8] sm:$0xff]
    %v427 = vld [vmem:[#allocation11 + $0xd0] sm:$0xff]
    %v428 = vld [vmem:[#allocation11 + $0xd8] sm:$0xff]
    %v429 = vld [vmem:[#allocation11 + $0xe0] sm:$0xff]
    %v430 = vld [vmem:[#allocation11 + $0xe8] sm:$0xff]
    %v431 = vld [vmem:[#allocation11 + $0xf0] sm:$0xff]
    %v432 = vld [vmem:[#allocation11 + $0xf8] sm:$0xff]
    %v433 = vld [vmem:[#allocation11 + $0x100] sm:$0xff]
    %v434 = vld [vmem:[#allocation11 + $0x108] sm:$0xff]
    %v435 = vld [vmem:[#allocation11 + $0x110] sm:$0xff]
    %v436 = vld [vmem:[#allocation11 + $0x118] sm:$0xff]
    %v437 = vld [vmem:[#allocation11 + $0x120] sm:$0xff]
    %v438 = vld [vmem:[#allocation11 + $0x128] sm:$0xff]
    %v439 = vld [vmem:[#allocation11 + $0x130] sm:$0xff]
    %v440 = vld [vmem:[#allocation11 + $0x138] sm:$0xff]
    %v441 = vld [vmem:[#allocation11 + $0x140] sm:$0xff]
    %v442 = vld [vmem:[#allocation11 + $0x148] sm:$0xff]
    %v443 = vld [vmem:[#allocation11 + $0x150] sm:$0xff]
    %v444 = vld [vmem:[#allocation11 + $0x158] sm:$0xff]
    %v445 = vld [vmem:[#allocation11 + $0x160] sm:$0xff]
    %v446 = vld [vmem:[#allocation11 + $0x168] sm:$0xff]
    %v447 = vld [vmem:[#allocation11 + $0x170] sm:$0xff]
    %v448 = vld [vmem:[#allocation11 + $0x178] sm:$0xff]
    %449 = vmatpush.msra.mxu0 %v446
    %450 = vmatpush.msra.mxu0 %v443
    %451 = vmatpush.msra.mxu0 %v440
    %452 = vmatpush.msra.mxu0 %v437
    %453 = vmatpush.msra.mxu0 %v434
    %454 = vmatpush.msra.mxu0 %v431
    %455 = vmatpush.msra.mxu0 %v428
    %456 = vmatpush.msra.mxu0 %v425
    %457 = vmatpush.msra.mxu0 %v422
    %458 = vmatpush.msra.mxu0 %v419
    %459 = vmatpush.msra.mxu0 %v416
    %460 = vmatpush.msra.mxu0 %v413
    %461 = vmatpush.msra.mxu0 %v410
    %462 = vmatpush.msra.mxu0 %v407
    %463 = vmatpush.msra.mxu0 %v404
    %464 = vmatpush.msra.mxu0 %v401
    %465 = vmatmul.f32.gmra.mxu0 %v400
    %v466 = vpop.f32.mrf.mxu0
    %v467 = vadd.f32 0.0, %v466
    %468 = vdwg.mxu0
    %469 = vmatpush.msra.mxu0 %v447
    %470 = vmatpush.msra.mxu0 %v444
    %471 = vmatpush.msra.mxu0 %v441
    %472 = vmatpush.msra.mxu0 %v438
    %473 = vmatpush.msra.mxu0 %v435
    %474 = vmatpush.msra.mxu0 %v432
    %475 = vmatpush.msra.mxu0 %v429
    %476 = vmatpush.msra.mxu0 %v426
    %477 = vmatpush.msra.mxu0 %v423
    %478 = vmatpush.msra.mxu0 %v420
    %479 = vmatpush.msra.mxu0 %v417
    %480 = vmatpush.msra.mxu0 %v414
    %481 = vmatpush.msra.mxu0 %v411
    %482 = vmatpush.msra.mxu0 %v408
    %483 = vmatpush.msra.mxu0 %v405
    %484 = vmatpush.msra.mxu0 %v402
    %485 = vmatmul.f32.gmra.mxu0 %v400
    %v486 = vpop.f32.mrf.mxu0
    %v487 = vadd.f32 0.0, %v486
    %488 = vdwg.mxu0
    %489 = vmatpush.msra.mxu0 %v448
    %490 = vmatpush.msra.mxu0 %v445
    %491 = vmatpush.msra.mxu0 %v442
    %492 = vmatpush.msra.mxu0 %v439
    %493 = vmatpush.msra.mxu0 %v436
    %494 = vmatpush.msra.mxu0 %v433
    %495 = vmatpush.msra.mxu0 %v430
    %496 = vmatpush.msra.mxu0 %v427
    %497 = vmatpush.msra.mxu0 %v424
    %498 = vmatpush.msra.mxu0 %v421
    %499 = vmatpush.msra.mxu0 %v418
    %500 = vmatpush.msra.mxu0 %v415
    %501 = vmatpush.msra.mxu0 %v412
    %502 = vmatpush.msra.mxu0 %v409
    %503 = vmatpush.msra.mxu0 %v406
    %504 = vmatpush.msra.mxu0 %v403
    %505 = vmatmul.f32.gmra.mxu0 %v400
    %v506 = vpop.f32.mrf.mxu0
    %v507 = vadd.f32 0.0, %v506
    %508 = vdwg.mxu0
    %v509 = vadd.f32 %v291, %v467
    %v510 = vxor.u32 %v509, 2147483648
    %v511 = vmul.f32 %v510, 1.442695
    %v512 = vpow.pop %v511
    %v513 = vadd.f32 %v512, 1.0
    %v514 = vrcp.pop %v513
    %v515 = vmul.f32 %v513, %v514
    %v516 = vsub.f32 1.0, %v515
    %v517 = vmul.f32 %v514, %v516
    %v518 = vadd.f32 %v514, %v517
    %vm519 = vweird.f32 %v513
    %vm520 = vweird.f32 %v514
    %vm521 = vmor %vm519, %vm520
    %v522 = vsel %vm521, %v514, %v518
    %v523 = vand.u32 2147483647, %v513
    %vm524 = vcmp.eq.f32.partialorder %v523, 8.507059e+37
    %v525 = vand.u32 %v513, 2147483648
    %v526 = vor.u32 1.1754944e-38, %v525
    %v527 = vsel %vm524, %v526, %v522
    %v528 = vmul.f32 1.0, %v527
    %v529 = vadd.f32 %v332, %v487
    %v530 = vxor.u32 %v529, 2147483648
    %v531 = vmul.f32 %v530, 1.442695
    %v532 = vpow.pop %v531
    %v533 = vadd.f32 %v532, 1.0
    %v534 = vrcp.pop %v533
    %v535 = vmul.f32 %v533, %v534
    %v536 = vsub.f32 1.0, %v535
    %v537 = vmul.f32 %v534, %v536
    %v538 = vadd.f32 %v534, %v537
    %vm539 = vweird.f32 %v533
    %vm540 = vweird.f32 %v534
    %vm541 = vmor %vm539, %vm540
    %v542 = vsel %vm541, %v534, %v538
    %v543 = vand.u32 2147483647, %v533
    %vm544 = vcmp.eq.f32.partialorder %v543, 8.507059e+37
    %v545 = vand.u32 %v533, 2147483648
    %v546 = vor.u32 1.1754944e-38, %v545
    %v547 = vsel %vm544, %v546, %v542
    %v548 = vmul.f32 1.0, %v547
    %v549 = vadd.f32 %v507, %v398
    %v550 = vmul.f32 %v528, %v549
    %v551 = vadd.f32 %v373, %v550
    %v552 = vtanh.pop %v551
    %v553 = vsub.f32 %v400, %v552
    %v554 = vmul.f32 %v548, %v553
    %v555 = vadd.f32 %v552, %v554
    %556 = vst [vmem:[#allocation2] sm:$0xff] %v555
    %v557 = vld [vmem:[#allocation11] sm:$0xff]
    %v558 = vld [vmem:[#allocation11 + $0x8] sm:$0xff]
    %v559 = vld [vmem:[#allocation11 + $0x10] sm:$0xff]
    %v560 = vld [vmem:[#allocation11 + $0x18] sm:$0xff]
    %v561 = vld [vmem:[#allocation11 + $0x20] sm:$0xff]
    %v562 = vld [vmem:[#allocation11 + $0x28] sm:$0xff]
    %v563 = vld [vmem:[#allocation11 + $0x30] sm:$0xff]
    %v564 = vld [vmem:[#allocation11 + $0x38] sm:$0xff]
    %v565 = vld [vmem:[#allocation11 + $0x40] sm:$0xff]
    %v566 = vld [vmem:[#allocation11 + $0x48] sm:$0xff]
    %v567 = vld [vmem:[#allocation11 + $0x50] sm:$0xff]
    %v568 = vld [vmem:[#allocation11 + $0x58] sm:$0xff]
    %v569 = vld [vmem:[#allocation11 + $0x60] sm:$0xff]
    %v570 = vld [vmem:[#allocation11 + $0x68] sm:$0xff]
    %v571 = vld [vmem:[#allocation11 + $0x70] sm:$0xff]
    %v572 = vld [vmem:[#allocation11 + $0x78] sm:$0xff]
    %v573 = vld [vmem:[#allocation11 + $0x80] sm:$0xff]
    %v574 = vld [vmem:[#allocation11 + $0x88] sm:$0xff]
    %v575 = vld [vmem:[#allocation11 + $0x90] sm:$0xff]
    %v576 = vld [vmem:[#allocation11 + $0x98] sm:$0xff]
    %v577 = vld [vmem:[#allocation11 + $0xa0] sm:$0xff]
    %v578 = vld [vmem:[#allocation11 + $0xa8] sm:$0xff]
    %v579 = vld [vmem:[#allocation11 + $0xb0] sm:$0xff]
    %v580 = vld [vmem:[#allocation11 + $0xb8] sm:$0xff]
    %v581 = vld [vmem:[#allocation11 + $0xc0] sm:$0xff]
    %v582 = vld [vmem:[#allocation11 + $0xc8] sm:$0xff]
    %v583 = vld [vmem:[#allocation11 + $0xd0] sm:$0xff]
    %v584 = vld [vmem:[#allocation11 + $0xd8] sm:$0xff]
    %v585 = vld [vmem:[#allocation11 + $0xe0] sm:$0xff]
    %v586 = vld [vmem:[#allocation11 + $0xe8] sm:$0xff]
    %v587 = vld [vmem:[#allocation11 + $0xf0] sm:$0xff]
    %v588 = vld [vmem:[#allocation11 + $0xf8] sm:$0xff]
    %v589 = vld [vmem:[#allocation11 + $0x100] sm:$0xff]
    %v590 = vld [vmem:[#allocation11 + $0x108] sm:$0xff]
    %v591 = vld [vmem:[#allocation11 + $0x110] sm:$0xff]
    %v592 = vld [vmem:[#allocation11 + $0x118] sm:$0xff]
    %v593 = vld [vmem:[#allocation11 + $0x120] sm:$0xff]
    %v594 = vld [vmem:[#allocation11 + $0x128] sm:$0xff]
    %v595 = vld [vmem:[#allocation11 + $0x130] sm:$0xff]
    %v596 = vld [vmem:[#allocation11 + $0x138] sm:$0xff]
    %v597 = vld [vmem:[#allocation11 + $0x140] sm:$0xff]
    %v598 = vld [vmem:[#allocation11 + $0x148] sm:$0xff]
    %v599 = vld [vmem:[#allocation11 + $0x150] sm:$0xff]
    %v600 = vld [vmem:[#allocation11 + $0x158] sm:$0xff]
    %v601 = vld [vmem:[#allocation11 + $0x160] sm:$0xff]
    %v602 = vld [vmem:[#allocation11 + $0x168] sm:$0xff]
    %v603 = vld [vmem:[#allocation11 + $0x170] sm:$0xff]
    %v604 = vld [vmem:[#allocation11 + $0x178] sm:$0xff]
    %605 = vmatpush.msra.mxu0 %v602
    %606 = vmatpush.msra.mxu0 %v599
    %607 = vmatpush.msra.mxu0 %v596
    %608 = vmatpush.msra.mxu0 %v593
    %609 = vmatpush.msra.mxu0 %v590
    %610 = vmatpush.msra.mxu0 %v587
    %611 = vmatpush.msra.mxu0 %v584
    %612 = vmatpush.msra.mxu0 %v581
    %613 = vmatpush.msra.mxu0 %v578
    %614 = vmatpush.msra.mxu0 %v575
    %615 = vmatpush.msra.mxu0 %v572
    %616 = vmatpush.msra.mxu0 %v569
    %617 = vmatpush.msra.mxu0 %v566
    %618 = vmatpush.msra.mxu0 %v563
    %619 = vmatpush.msra.mxu0 %v560
    %620 = vmatpush.msra.mxu0 %v557
    %621 = vmatmul.f32.gmra.mxu0 %v555
    %v622 = vpop.f32.mrf.mxu0
    %v623 = vadd.f32 0.0, %v622
    %624 = vdwg.mxu0
    %625 = vmatpush.msra.mxu0 %v603
    %626 = vmatpush.msra.mxu0 %v600
    %627 = vmatpush.msra.mxu0 %v597
    %628 = vmatpush.msra.mxu0 %v594
    %629 = vmatpush.msra.mxu0 %v591
    %630 = vmatpush.msra.mxu0 %v588
    %631 = vmatpush.msra.mxu0 %v585
    %632 = vmatpush.msra.mxu0 %v582
    %633 = vmatpush.msra.mxu0 %v579
    %634 = vmatpush.msra.mxu0 %v576
    %635 = vmatpush.msra.mxu0 %v573
    %636 = vmatpush.msra.mxu0 %v570
    %637 = vmatpush.msra.mxu0 %v567
    %638 = vmatpush.msra.mxu0 %v564
    %639 = vmatpush.msra.mxu0 %v561
    %640 = vmatpush.msra.mxu0 %v558
    %641 = vmatmul.f32.gmra.mxu0 %v555
    %v642 = vpop.f32.mrf.mxu0
    %v643 = vadd.f32 0.0, %v642
    %644 = vdwg.mxu0
    %645 = vmatpush.msra.mxu0 %v604
    %646 = vmatpush.msra.mxu0 %v601
    %647 = vmatpush.msra.mxu0 %v598
    %648 = vmatpush.msra.mxu0 %v595
    %649 = vmatpush.msra.mxu0 %v592
    %650 = vmatpush.msra.mxu0 %v589
    %651 = vmatpush.msra.mxu0 %v586
    %652 = vmatpush.msra.mxu0 %v583
    %653 = vmatpush.msra.mxu0 %v580
    %654 = vmatpush.msra.mxu0 %v577
    %655 = vmatpush.msra.mxu0 %v574
    %656 = vmatpush.msra.mxu0 %v571
    %657 = vmatpush.msra.mxu0 %v568
    %658 = vmatpush.msra.mxu0 %v565
    %659 = vmatpush.msra.mxu0 %v562
    %660 = vmatpush.msra.mxu0 %v559
    %661 = vmatmul.f32.gmra.mxu0 %v555
    %v662 = vpop.f32.mrf.mxu0
    %v663 = vadd.f32 0.0, %v662
    %664 = vdwg.mxu0
    %v665 = vadd.f32 %v294, %v623
    %v666 = vxor.u32 %v665, 2147483648
    %v667 = vmul.f32 %v666, 1.442695
    %v668 = vpow.pop %v667
    %v669 = vadd.f32 %v668, 1.0
    %v670 = vrcp.pop %v669
    %v671 = vmul.f32 %v669, %v670
    %v672 = vsub.f32 1.0, %v671
    %v673 = vmul.f32 %v670, %v672
    %v674 = vadd.f32 %v670, %v673
    %vm675 = vweird.f32 %v669
    %vm676 = vweird.f32 %v670
    %vm677 = vmor %vm675, %vm676
    %v678 = vsel %vm677, %v670, %v674
    %v679 = vand.u32 2147483647, %v669
    %vm680 = vcmp.eq.f32.partialorder %v679, 8.507059e+37
    %v681 = vand.u32 %v669, 2147483648
    %v682 = vor.u32 1.1754944e-38, %v681
    %v683 = vsel %vm680, %v682, %v678
    %v684 = vmul.f32 1.0, %v683
    %v685 = vadd.f32 %v335, %v643
    %v686 = vxor.u32 %v685, 2147483648
    %v687 = vmul.f32 %v686, 1.442695
    %v688 = vpow.pop %v687
    %v689 = vadd.f32 %v688, 1.0
    %v690 = vrcp.pop %v689
    %v691 = vmul.f32 %v689, %v690
    %v692 = vsub.f32 1.0, %v691
    %v693 = vmul.f32 %v690, %v692
    %v694 = vadd.f32 %v690, %v693
    %vm695 = vweird.f32 %v689
    %vm696 = vweird.f32 %v690
    %vm697 = vmor %vm695, %vm696
    %v698 = vsel %vm697, %v690, %v694
    %v699 = vand.u32 2147483647, %v689
    %vm700 = vcmp.eq.f32.partialorder %v699, 8.507059e+37
    %v701 = vand.u32 %v689, 2147483648
    %v702 = vor.u32 1.1754944e-38, %v701
    %v703 = vsel %vm700, %v702, %v698
    %v704 = vmul.f32 1.0, %v703
    %v705 = vadd.f32 %v663, %v398
    %v706 = vmul.f32 %v684, %v705
    %v707 = vadd.f32 %v376, %v706
    %v708 = vtanh.pop %v707
    %v709 = vsub.f32 %v555, %v708
    %v710 = vmul.f32 %v704, %v709
    %v711 = vadd.f32 %v708, %v710
    %s712 = scalar_lea.vmem [#allocation2], 8
    %713 = vst [vmem:[%s712] sm:$0xff] %v711
    %v714 = vld [vmem:[#allocation11] sm:$0xff]
    %v715 = vld [vmem:[#allocation11 + $0x8] sm:$0xff]
    %v716 = vld [vmem:[#allocation11 + $0x10] sm:$0xff]
    %v717 = vld [vmem:[#allocation11 + $0x18] sm:$0xff]
    %v718 = vld [vmem:[#allocation11 + $0x20] sm:$0xff]
    %v719 = vld [vmem:[#allocation11 + $0x28] sm:$0xff]
    %v720 = vld [vmem:[#allocation11 + $0x30] sm:$0xff]
    %v721 = vld [vmem:[#allocation11 + $0x38] sm:$0xff]
    %v722 = vld [vmem:[#allocation11 + $0x40] sm:$0xff]
    %v723 = vld [vmem:[#allocation11 + $0x48] sm:$0xff]
    %v724 = vld [vmem:[#allocation11 + $0x50] sm:$0xff]
    %v725 = vld [vmem:[#allocation11 + $0x58] sm:$0xff]
    %v726 = vld [vmem:[#allocation11 + $0x60] sm:$0xff]
    %v727 = vld [vmem:[#allocation11 + $0x68] sm:$0xff]
    %v728 = vld [vmem:[#allocation11 + $0x70] sm:$0xff]
    %v729 = vld [vmem:[#allocation11 + $0x78] sm:$0xff]
    %v730 = vld [vmem:[#allocation11 + $0x80] sm:$0xff]
    %v731 = vld [vmem:[#allocation11 + $0x88] sm:$0xff]
    %v732 = vld [vmem:[#allocation11 + $0x90] sm:$0xff]
    %v733 = vld [vmem:[#allocation11 + $0x98] sm:$0xff]
    %v734 = vld [vmem:[#allocation11 + $0xa0] sm:$0xff]
    %v735 = vld [vmem:[#allocation11 + $0xa8] sm:$0xff]
    %v736 = vld [vmem:[#allocation11 + $0xb0] sm:$0xff]
    %v737 = vld [vmem:[#allocation11 + $0xb8] sm:$0xff]
    %v738 = vld [vmem:[#allocation11 + $0xc0] sm:$0xff]
    %v739 = vld [vmem:[#allocation11 + $0xc8] sm:$0xff]
    %v740 = vld [vmem:[#allocation11 + $0xd0] sm:$0xff]
    %v741 = vld [vmem:[#allocation11 + $0xd8] sm:$0xff]
    %v742 = vld [vmem:[#allocation11 + $0xe0] sm:$0xff]
    %v743 = vld [vmem:[#allocation11 + $0xe8] sm:$0xff]
    %v744 = vld [vmem:[#allocation11 + $0xf0] sm:$0xff]
    %v745 = vld [vmem:[#allocation11 + $0xf8] sm:$0xff]
    %v746 = vld [vmem:[#allocation11 + $0x100] sm:$0xff]
    %v747 = vld [vmem:[#allocation11 + $0x108] sm:$0xff]
    %v748 = vld [vmem:[#allocation11 + $0x110] sm:$0xff]
    %v749 = vld [vmem:[#allocation11 + $0x118] sm:$0xff]
    %v750 = vld [vmem:[#allocation11 + $0x120] sm:$0xff]
    %v751 = vld [vmem:[#allocation11 + $0x128] sm:$0xff]
    %v752 = vld [vmem:[#allocation11 + $0x130] sm:$0xff]
    %v753 = vld [vmem:[#allocation11 + $0x138] sm:$0xff]
    %v754 = vld [vmem:[#allocation11 + $0x140] sm:$0xff]
    %v755 = vld [vmem:[#allocation11 + $0x148] sm:$0xff]
    %v756 = vld [vmem:[#allocation11 + $0x150] sm:$0xff]
    %v757 = vld [vmem:[#allocation11 + $0x158] sm:$0xff]
    %v758 = vld [vmem:[#allocation11 + $0x160] sm:$0xff]
    %v759 = vld [vmem:[#allocation11 + $0x168] sm:$0xff]
    %v760 = vld [vmem:[#allocation11 + $0x170] sm:$0xff]
    %v761 = vld [vmem:[#allocation11 + $0x178] sm:$0xff]
    %762 = vmatpush.msra.mxu0 %v759
    %763 = vmatpush.msra.mxu0 %v756
    %764 = vmatpush.msra.mxu0 %v753
    %765 = vmatpush.msra.mxu0 %v750
    %766 = vmatpush.msra.mxu0 %v747
    %767 = vmatpush.msra.mxu0 %v744
    %768 = vmatpush.msra.mxu0 %v741
    %769 = vmatpush.msra.mxu0 %v738
    %770 = vmatpush.msra.mxu0 %v735
    %771 = vmatpush.msra.mxu0 %v732
    %772 = vmatpush.msra.mxu0 %v729
    %773 = vmatpush.msra.mxu0 %v726
    %774 = vmatpush.msra.mxu0 %v723
    %775 = vmatpush.msra.mxu0 %v720
    %776 = vmatpush.msra.mxu0 %v717
    %777 = vmatpush.msra.mxu0 %v714
    %778 = vmatmul.f32.gmra.mxu0 %v711
    %v779 = vpop.f32.mrf.mxu0
    %v780 = vadd.f32 0.0, %v779
    %781 = vdwg.mxu0
    %782 = vmatpush.msra.mxu0 %v760
    %783 = vmatpush.msra.mxu0 %v757
    %784 = vmatpush.msra.mxu0 %v754
    %785 = vmatpush.msra.mxu0 %v751
    %786 = vmatpush.msra.mxu0 %v748
    %787 = vmatpush.msra.mxu0 %v745
    %788 = vmatpush.msra.mxu0 %v742
    %789 = vmatpush.msra.mxu0 %v739
    %790 = vmatpush.msra.mxu0 %v736
    %791 = vmatpush.msra.mxu0 %v733
    %792 = vmatpush.msra.mxu0 %v730
    %793 = vmatpush.msra.mxu0 %v727
    %794 = vmatpush.msra.mxu0 %v724
    %795 = vmatpush.msra.mxu0 %v721
    %796 = vmatpush.msra.mxu0 %v718
    %797 = vmatpush.msra.mxu0 %v715
    %798 = vmatmul.f32.gmra.mxu0 %v711
    %v799 = vpop.f32.mrf.mxu0
    %v800 = vadd.f32 0.0, %v799
    %801 = vdwg.mxu0
    %802 = vmatpush.msra.mxu0 %v761
    %803 = vmatpush.msra.mxu0 %v758
    %804 = vmatpush.msra.mxu0 %v755
    %805 = vmatpush.msra.mxu0 %v752
    %806 = vmatpush.msra.mxu0 %v749
    %807 = vmatpush.msra.mxu0 %v746
    %808 = vmatpush.msra.mxu0 %v743
    %809 = vmatpush.msra.mxu0 %v740
    %810 = vmatpush.msra.mxu0 %v737
    %811 = vmatpush.msra.mxu0 %v734
    %812 = vmatpush.msra.mxu0 %v731
    %813 = vmatpush.msra.mxu0 %v728
    %814 = vmatpush.msra.mxu0 %v725
    %815 = vmatpush.msra.mxu0 %v722
    %816 = vmatpush.msra.mxu0 %v719
    %817 = vmatpush.msra.mxu0 %v716
    %818 = vmatmul.f32.gmra.mxu0 %v711
    %v819 = vpop.f32.mrf.mxu0
    %v820 = vadd.f32 0.0, %v819
    %821 = vdwg.mxu0
    %v822 = vadd.f32 %v297, %v780
    %v823 = vxor.u32 %v822, 2147483648
    %v824 = vmul.f32 %v823, 1.442695
    %v825 = vpow.pop %v824
    %v826 = vadd.f32 %v825, 1.0
    %v827 = vrcp.pop %v826
    %v828 = vmul.f32 %v826, %v827
    %v829 = vsub.f32 1.0, %v828
    %v830 = vmul.f32 %v827, %v829
    %v831 = vadd.f32 %v827, %v830
    %vm832 = vweird.f32 %v826
    %vm833 = vweird.f32 %v827
    %vm834 = vmor %vm832, %vm833
    %v835 = vsel %vm834, %v827, %v831
    %v836 = vand.u32 2147483647, %v826
    %vm837 = vcmp.eq.f32.partialorder %v836, 8.507059e+37
    %v838 = vand.u32 %v826, 2147483648
    %v839 = vor.u32 1.1754944e-38, %v838
    %v840 = vsel %vm837, %v839, %v835
    %v841 = vmul.f32 1.0, %v840
    %v842 = vadd.f32 %v338, %v800
    %v843 = vxor.u32 %v842, 2147483648
    %v844 = vmul.f32 %v843, 1.442695
    %v845 = vpow.pop %v844
    %v846 = vadd.f32 %v845, 1.0
    %v847 = vrcp.pop %v846
    %v848 = vmul.f32 %v846, %v847
    %v849 = vsub.f32 1.0, %v848
    %v850 = vmul.f32 %v847, %v849
    %v851 = vadd.f32 %v847, %v850
    %vm852 = vweird.f32 %v846
    %vm853 = vweird.f32 %v847
    %vm854 = vmor %vm852, %vm853
    %v855 = vsel %vm854, %v847, %v851
    %v856 = vand.u32 2147483647, %v846
    %vm857 = vcmp.eq.f32.partialorder %v856, 8.507059e+37
    %v858 = vand.u32 %v846, 2147483648
    %v859 = vor.u32 1.1754944e-38, %v858
    %v860 = vsel %vm857, %v859, %v855
    %v861 = vmul.f32 1.0, %v860
    %v862 = vadd.f32 %v820, %v398
    %v863 = vmul.f32 %v841, %v862
    %v864 = vadd.f32 %v379, %v863
    %v865 = vtanh.pop %v864
    %v866 = vsub.f32 %v711, %v865
    %v867 = vmul.f32 %v861, %v866
    %v868 = vadd.f32 %v865, %v867
    %s869 = scalar_lea.vmem [#allocation2], 16
    %870 = vst [vmem:[%s869] sm:$0xff] %v868
    %v871 = vld [vmem:[#allocation11] sm:$0xff]
    %v872 = vld [vmem:[#allocation11 + $0x8] sm:$0xff]
    %v873 = vld [vmem:[#allocation11 + $0x10] sm:$0xff]
    %v874 = vld [vmem:[#allocation11 + $0x18] sm:$0xff]
    %v875 = vld [vmem:[#allocation11 + $0x20] sm:$0xff]
    %v876 = vld [vmem:[#allocation11 + $0x28] sm:$0xff]
    %v877 = vld [vmem:[#allocation11 + $0x30] sm:$0xff]
    %v878 = vld [vmem:[#allocation11 + $0x38] sm:$0xff]
    %v879 = vld [vmem:[#allocation11 + $0x40] sm:$0xff]
    %v880 = vld [vmem:[#allocation11 + $0x48] sm:$0xff]
    %v881 = vld [vmem:[#allocation11 + $0x50] sm:$0xff]
    %v882 = vld [vmem:[#allocation11 + $0x58] sm:$0xff]
    %v883 = vld [vmem:[#allocation11 + $0x60] sm:$0xff]
    %v884 = vld [vmem:[#allocation11 + $0x68] sm:$0xff]
    %v885 = vld [vmem:[#allocation11 + $0x70] sm:$0xff]
    %v886 = vld [vmem:[#allocation11 + $0x78] sm:$0xff]
    %v887 = vld [vmem:[#allocation11 + $0x80] sm:$0xff]
    %v888 = vld [vmem:[#allocation11 + $0x88] sm:$0xff]
    %v889 = vld [vmem:[#allocation11 + $0x90] sm:$0xff]
    %v890 = vld [vmem:[#allocation11 + $0x98] sm:$0xff]
    %v891 = vld [vmem:[#allocation11 + $0xa0] sm:$0xff]
    %v892 = vld [vmem:[#allocation11 + $0xa8] sm:$0xff]
    %v893 = vld [vmem:[#allocation11 + $0xb0] sm:$0xff]
    %v894 = vld [vmem:[#allocation11 + $0xb8] sm:$0xff]
    %v895 = vld [vmem:[#allocation11 + $0xc0] sm:$0xff]
    %v896 = vld [vmem:[#allocation11 + $0xc8] sm:$0xff]
    %v897 = vld [vmem:[#allocation11 + $0xd0] sm:$0xff]
    %v898 = vld [vmem:[#allocation11 + $0xd8] sm:$0xff]
    %v899 = vld [vmem:[#allocation11 + $0xe0] sm:$0xff]
    %v900 = vld [vmem:[#allocation11 + $0xe8] sm:$0xff]
    %v901 = vld [vmem:[#allocation11 + $0xf0] sm:$0xff]
    %v902 = vld [vmem:[#allocation11 + $0xf8] sm:$0xff]
    %v903 = vld [vmem:[#allocation11 + $0x100] sm:$0xff]
    %v904 = vld [vmem:[#allocation11 + $0x108] sm:$0xff]
    %v905 = vld [vmem:[#allocation11 + $0x110] sm:$0xff]
    %v906 = vld [vmem:[#allocation11 + $0x118] sm:$0xff]
    %v907 = vld [vmem:[#allocation11 + $0x120] sm:$0xff]
    %v908 = vld [vmem:[#allocation11 + $0x128] sm:$0xff]
    %v909 = vld [vmem:[#allocation11 + $0x130] sm:$0xff]
    %v910 = vld [vmem:[#allocation11 + $0x138] sm:$0xff]
    %v911 = vld [vmem:[#allocation11 + $0x140] sm:$0xff]
    %v912 = vld [vmem:[#allocation11 + $0x148] sm:$0xff]
    %v913 = vld [vmem:[#allocation11 + $0x150] sm:$0xff]
    %v914 = vld [vmem:[#allocation11 + $0x158] sm:$0xff]
    %v915 = vld [vmem:[#allocation11 + $0x160] sm:$0xff]
    %v916 = vld [vmem:[#allocation11 + $0x168] sm:$0xff]
    %v917 = vld [vmem:[#allocation11 + $0x170] sm:$0xff]
    %v918 = vld [vmem:[#allocation11 + $0x178] sm:$0xff]
    %919 = vmatpush.msra.mxu0 %v916
    %920 = vmatpush.msra.mxu0 %v913
    %921 = vmatpush.msra.mxu0 %v910
    %922 = vmatpush.msra.mxu0 %v907
    %923 = vmatpush.msra.mxu0 %v904
    %924 = vmatpush.msra.mxu0 %v901
    %925 = vmatpush.msra.mxu0 %v898
    %926 = vmatpush.msra.mxu0 %v895
    %927 = vmatpush.msra.mxu0 %v892
    %928 = vmatpush.msra.mxu0 %v889
    %929 = vmatpush.msra.mxu0 %v886
    %930 = vmatpush.msra.mxu0 %v883
    %931 = vmatpush.msra.mxu0 %v880
    %932 = vmatpush.msra.mxu0 %v877
    %933 = vmatpush.msra.mxu0 %v874
    %934 = vmatpush.msra.mxu0 %v871
    %935 = vmatmul.f32.gmra.mxu0 %v868
    %v936 = vpop.f32.mrf.mxu0
    %v937 = vadd.f32 0.0, %v936
    %938 = vdwg.mxu0
    %939 = vmatpush.msra.mxu0 %v917
    %940 = vmatpush.msra.mxu0 %v914
    %941 = vmatpush.msra.mxu0 %v911
    %942 = vmatpush.msra.mxu0 %v908
    %943 = vmatpush.msra.mxu0 %v905
    %944 = vmatpush.msra.mxu0 %v902
    %945 = vmatpush.msra.mxu0 %v899
    %946 = vmatpush.msra.mxu0 %v896
    %947 = vmatpush.msra.mxu0 %v893
    %948 = vmatpush.msra.mxu0 %v890
    %949 = vmatpush.msra.mxu0 %v887
    %950 = vmatpush.msra.mxu0 %v884
    %951 = vmatpush.msra.mxu0 %v881
    %952 = vmatpush.msra.mxu0 %v878
    %953 = vmatpush.msra.mxu0 %v875
    %954 = vmatpush.msra.mxu0 %v872
    %955 = vmatmul.f32.gmra.mxu0 %v868
    %v956 = vpop.f32.mrf.mxu0
    %v957 = vadd.f32 0.0, %v956
    %958 = vdwg.mxu0
    %959 = vmatpush.msra.mxu0 %v918
    %960 = vmatpush.msra.mxu0 %v915
    %961 = vmatpush.msra.mxu0 %v912
    %962 = vmatpush.msra.mxu0 %v909
    %963 = vmatpush.msra.mxu0 %v906
    %964 = vmatpush.msra.mxu0 %v903
    %965 = vmatpush.msra.mxu0 %v900
    %966 = vmatpush.msra.mxu0 %v897
    %967 = vmatpush.msra.mxu0 %v894
    %968 = vmatpush.msra.mxu0 %v891
    %969 = vmatpush.msra.mxu0 %v888
    %970 = vmatpush.msra.mxu0 %v885
    %971 = vmatpush.msra.mxu0 %v882
    %972 = vmatpush.msra.mxu0 %v879
    %973 = vmatpush.msra.mxu0 %v876
    %974 = vmatpush.msra.mxu0 %v873
    %975 = vmatmul.f32.gmra.mxu0 %v868
    %v976 = vpop.f32.mrf.mxu0
    %v977 = vadd.f32 0.0, %v976
    %978 = vdwg.mxu0
    %v979 = vadd.f32 %v300, %v937
    %v980 = vxor.u32 %v979, 2147483648
    %v981 = vmul.f32 %v980, 1.442695
    %v982 = vpow.pop %v981
    %v983 = vadd.f32 %v982, 1.0
    %v984 = vrcp.pop %v983
    %v985 = vmul.f32 %v983, %v984
    %v986 = vsub.f32 1.0, %v985
    %v987 = vmul.f32 %v984, %v986
    %v988 = vadd.f32 %v984, %v987
    %vm989 = vweird.f32 %v983
    %vm990 = vweird.f32 %v984
    %vm991 = vmor %vm989, %vm990
    %v992 = vsel %vm991, %v984, %v988
    %v993 = vand.u32 2147483647, %v983
    %vm994 = vcmp.eq.f32.partialorder %v993, 8.507059e+37
    %v995 = vand.u32 %v983, 2147483648
    %v996 = vor.u32 1.1754944e-38, %v995
    %v997 = vsel %vm994, %v996, %v992
    %v998 = vmul.f32 1.0, %v997
    %v999 = vadd.f32 %v341, %v957
    %v1000 = vxor.u32 %v999, 2147483648
    %v1001 = vmul.f32 %v1000, 1.442695
    %v1002 = vpow.pop %v1001
    %v1003 = vadd.f32 %v1002, 1.0
    %v1004 = vrcp.pop %v1003
    %v1005 = vmul.f32 %v1003, %v1004
    %v1006 = vsub.f32 1.0, %v1005
    %v1007 = vmul.f32 %v1004, %v1006
    %v1008 = vadd.f32 %v1004, %v1007
    %vm1009 = vweird.f32 %v1003
    %vm1010 = vweird.f32 %v1004
    %vm1011 = vmor %vm1009, %vm1010
    %v1012 = vsel %vm1011, %v1004, %v1008
    %v1013 = vand.u32 2147483647, %v1003
    %vm1014 = vcmp.eq.f32.partialorder %v1013, 8.507059e+37
    %v1015 = vand.u32 %v1003, 2147483648
    %v1016 = vor.u32 1.1754944e-38, %v1015
    %v1017 = vsel %vm1014, %v1016, %v1012
    %v1018 = vmul.f32 1.0, %v1017
    %v1019 = vadd.f32 %v977, %v398
    %v1020 = vmul.f32 %v998, %v1019
    %v1021 = vadd.f32 %v382, %v1020
    %v1022 = vtanh.pop %v1021
    %v1023 = vsub.f32 %v868, %v1022
    %v1024 = vmul.f32 %v1018, %v1023
    %v1025 = vadd.f32 %v1022, %v1024
    %s1026 = scalar_lea.vmem [#allocation2], 24
    %1027 = vst [vmem:[%s1026] sm:$0xff] %v1025
    %v1028 = vld [vmem:[#allocation11] sm:$0xff]
    %v1029 = vld [vmem:[#allocation11 + $0x8] sm:$0xff]
    %v1030 = vld [vmem:[#allocation11 + $0x10] sm:$0xff]
    %v1031 = vld [vmem:[#allocation11 + $0x18] sm:$0xff]
    %v1032 = vld [vmem:[#allocation11 + $0x20] sm:$0xff]
    %v1033 = vld [vmem:[#allocation11 + $0x28] sm:$0xff]
    %v1034 = vld [vmem:[#allocation11 + $0x30] sm:$0xff]
    %v1035 = vld [vmem:[#allocation11 + $0x38] sm:$0xff]
    %v1036 = vld [vmem:[#allocation11 + $0x40] sm:$0xff]
    %v1037 = vld [vmem:[#allocation11 + $0x48] sm:$0xff]
    %v1038 = vld [vmem:[#allocation11 + $0x50] sm:$0xff]
    %v1039 = vld [vmem:[#allocation11 + $0x58] sm:$0xff]
    %v1040 = vld [vmem:[#allocation11 + $0x60] sm:$0xff]
    %v1041 = vld [vmem:[#allocation11 + $0x68] sm:$0xff]
    %v1042 = vld [vmem:[#allocation11 + $0x70] sm:$0xff]
    %v1043 = vld [vmem:[#allocation11 + $0x78] sm:$0xff]
    %v1044 = vld [vmem:[#allocation11 + $0x80] sm:$0xff]
    %v1045 = vld [vmem:[#allocation11 + $0x88] sm:$0xff]
    %v1046 = vld [vmem:[#allocation11 + $0x90] sm:$0xff]
    %v1047 = vld [vmem:[#allocation11 + $0x98] sm:$0xff]
    %v1048 = vld [vmem:[#allocation11 + $0xa0] sm:$0xff]
    %v1049 = vld [vmem:[#allocation11 + $0xa8] sm:$0xff]
    %v1050 = vld [vmem:[#allocation11 + $0xb0] sm:$0xff]
    %v1051 = vld [vmem:[#allocation11 + $0xb8] sm:$0xff]
    %v1052 = vld [vmem:[#allocation11 + $0xc0] sm:$0xff]
    %v1053 = vld [vmem:[#allocation11 + $0xc8] sm:$0xff]
    %v1054 = vld [vmem:[#allocation11 + $0xd0] sm:$0xff]
    %v1055 = vld [vmem:[#allocation11 + $0xd8] sm:$0xff]
    %v1056 = vld [vmem:[#allocation11 + $0xe0] sm:$0xff]
    %v1057 = vld [vmem:[#allocation11 + $0xe8] sm:$0xff]
    %v1058 = vld [vmem:[#allocation11 + $0xf0] sm:$0xff]
    %v1059 = vld [vmem:[#allocation11 + $0xf8] sm:$0xff]
    %v1060 = vld [vmem:[#allocation11 + $0x100] sm:$0xff]
    %v1061 = vld [vmem:[#allocation11 + $0x108] sm:$0xff]
    %v1062 = vld [vmem:[#allocation11 + $0x110] sm:$0xff]
    %v1063 = vld [vmem:[#allocation11 + $0x118] sm:$0xff]
    %v1064 = vld [vmem:[#allocation11 + $0x120] sm:$0xff]
    %v1065 = vld [vmem:[#allocation11 + $0x128] sm:$0xff]
    %v1066 = vld [vmem:[#allocation11 + $0x130] sm:$0xff]
    %v1067 = vld [vmem:[#allocation11 + $0x138] sm:$0xff]
    %v1068 = vld [vmem:[#allocation11 + $0x140] sm:$0xff]
    %v1069 = vld [vmem:[#allocation11 + $0x148] sm:$0xff]
    %v1070 = vld [vmem:[#allocation11 + $0x150] sm:$0xff]
    %v1071 = vld [vmem:[#allocation11 + $0x158] sm:$0xff]
    %v1072 = vld [vmem:[#allocation11 + $0x160] sm:$0xff]
    %v1073 = vld [vmem:[#allocation11 + $0x168] sm:$0xff]
    %v1074 = vld [vmem:[#allocation11 + $0x170] sm:$0xff]
    %v1075 = vld [vmem:[#allocation11 + $0x178] sm:$0xff]
    %1076 = vmatpush.msra.mxu0 %v1073
    %1077 = vmatpush.msra.mxu0 %v1070
    %1078 = vmatpush.msra.mxu0 %v1067
    %1079 = vmatpush.msra.mxu0 %v1064
    %1080 = vmatpush.msra.mxu0 %v1061
    %1081 = vmatpush.msra.mxu0 %v1058
    %1082 = vmatpush.msra.mxu0 %v1055
    %1083 = vmatpush.msra.mxu0 %v1052
    %1084 = vmatpush.msra.mxu0 %v1049
    %1085 = vmatpush.msra.mxu0 %v1046
    %1086 = vmatpush.msra.mxu0 %v1043
    %1087 = vmatpush.msra.mxu0 %v1040
    %1088 = vmatpush.msra.mxu0 %v1037
    %1089 = vmatpush.msra.mxu0 %v1034
    %1090 = vmatpush.msra.mxu0 %v1031
    %1091 = vmatpush.msra.mxu0 %v1028
    %1092 = vmatmul.f32.gmra.mxu0 %v1025
    %v1093 = vpop.f32.mrf.mxu0
    %v1094 = vadd.f32 0.0, %v1093
    %1095 = vdwg.mxu0
    %1096 = vmatpush.msra.mxu0 %v1074
    %1097 = vmatpush.msra.mxu0 %v1071
    %1098 = vmatpush.msra.mxu0 %v1068
    %1099 = vmatpush.msra.mxu0 %v1065
    %1100 = vmatpush.msra.mxu0 %v1062
    %1101 = vmatpush.msra.mxu0 %v1059
    %1102 = vmatpush.msra.mxu0 %v1056
    %1103 = vmatpush.msra.mxu0 %v1053
    %1104 = vmatpush.msra.mxu0 %v1050
    %1105 = vmatpush.msra.mxu0 %v1047
    %1106 = vmatpush.msra.mxu0 %v1044
    %1107 = vmatpush.msra.mxu0 %v1041
    %1108 = vmatpush.msra.mxu0 %v1038
    %1109 = vmatpush.msra.mxu0 %v1035
    %1110 = vmatpush.msra.mxu0 %v1032
    %1111 = vmatpush.msra.mxu0 %v1029
    %1112 = vmatmul.f32.gmra.mxu0 %v1025
    %v1113 = vpop.f32.mrf.mxu0
    %v1114 = vadd.f32 0.0, %v1113
    %1115 = vdwg.mxu0
    %1116 = vmatpush.msra.mxu0 %v1075
    %1117 = vmatpush.msra.mxu0 %v1072
    %1118 = vmatpush.msra.mxu0 %v1069
    %1119 = vmatpush.msra.mxu0 %v1066
    %1120 = vmatpush.msra.mxu0 %v1063
    %1121 = vmatpush.msra.mxu0 %v1060
    %1122 = vmatpush.msra.mxu0 %v1057
    %1123 = vmatpush.msra.mxu0 %v1054
    %1124 = vmatpush.msra.mxu0 %v1051
    %1125 = vmatpush.msra.mxu0 %v1048
    %1126 = vmatpush.msra.mxu0 %v1045
    %1127 = vmatpush.msra.mxu0 %v1042
    %1128 = vmatpush.msra.mxu0 %v1039
    %1129 = vmatpush.msra.mxu0 %v1036
    %1130 = vmatpush.msra.mxu0 %v1033
    %1131 = vmatpush.msra.mxu0 %v1030
    %1132 = vmatmul.f32.gmra.mxu0 %v1025
    %v1133 = vpop.f32.mrf.mxu0
    %v1134 = vadd.f32 0.0, %v1133
    %1135 = vdwg.mxu0
    %v1136 = vadd.f32 %v303, %v1094
    %v1137 = vxor.u32 %v1136, 2147483648
    %v1138 = vmul.f32 %v1137, 1.442695
    %v1139 = vpow.pop %v1138
    %v1140 = vadd.f32 %v1139, 1.0
    %v1141 = vrcp.pop %v1140
    %v1142 = vmul.f32 %v1140, %v1141
    %v1143 = vsub.f32 1.0, %v1142
    %v1144 = vmul.f32 %v1141, %v1143
    %v1145 = vadd.f32 %v1141, %v1144
    %vm1146 = vweird.f32 %v1140
    %vm1147 = vweird.f32 %v1141
    %vm1148 = vmor %vm1146, %vm1147
    %v1149 = vsel %vm1148, %v1141, %v1145
    %v1150 = vand.u32 2147483647, %v1140
    %vm1151 = vcmp.eq.f32.partialorder %v1150, 8.507059e+37
    %v1152 = vand.u32 %v1140, 2147483648
    %v1153 = vor.u32 1.1754944e-38, %v1152
    %v1154 = vsel %vm1151, %v1153, %v1149
    %v1155 = vmul.f32 1.0, %v1154
    %v1156 = vadd.f32 %v344, %v1114
    %v1157 = vxor.u32 %v1156, 2147483648
    %v1158 = vmul.f32 %v1157, 1.442695
    %v1159 = vpow.pop %v1158
    %v1160 = vadd.f32 %v1159, 1.0
    %v1161 = vrcp.pop %v1160
    %v1162 = vmul.f32 %v1160, %v1161
    %v1163 = vsub.f32 1.0, %v1162
    %v1164 = vmul.f32 %v1161, %v1163
    %v1165 = vadd.f32 %v1161, %v1164
    %vm1166 = vweird.f32 %v1160
    %vm1167 = vweird.f32 %v1161
    %vm1168 = vmor %vm1166, %vm1167
    %v1169 = vsel %vm1168, %v1161, %v1165
    %v1170 = vand.u32 2147483647, %v1160
    %vm1171 = vcmp.eq.f32.partialorder %v1170, 8.507059e+37
    %v1172 = vand.u32 %v1160, 2147483648
    %v1173 = vor.u32 1.1754944e-38, %v1172
    %v1174 = vsel %vm1171, %v1173, %v1169
    %v1175 = vmul.f32 1.0, %v1174
    %v1176 = vadd.f32 %v1134, %v398
    %v1177 = vmul.f32 %v1155, %v1176
    %v1178 = vadd.f32 %v385, %v1177
    %v1179 = vtanh.pop %v1178
    %v1180 = vsub.f32 %v1025, %v1179
    %v1181 = vmul.f32 %v1175, %v1180
    %v1182 = vadd.f32 %v1179, %v1181
    %s1183 = scalar_lea.vmem [#allocation2], 32
    %1184 = vst [vmem:[%s1183] sm:$0xff] %v1182
    %v1185 = vld [vmem:[#allocation11] sm:$0xff]
    %v1186 = vld [vmem:[#allocation11 + $0x8] sm:$0xff]
    %v1187 = vld [vmem:[#allocation11 + $0x10] sm:$0xff]
    %v1188 = vld [vmem:[#allocation11 + $0x18] sm:$0xff]
    %v1189 = vld [vmem:[#allocation11 + $0x20] sm:$0xff]
    %v1190 = vld [vmem:[#allocation11 + $0x28] sm:$0xff]
    %v1191 = vld [vmem:[#allocation11 + $0x30] sm:$0xff]
    %v1192 = vld [vmem:[#allocation11 + $0x38] sm:$0xff]
    %v1193 = vld [vmem:[#allocation11 + $0x40] sm:$0xff]
    %v1194 = vld [vmem:[#allocation11 + $0x48] sm:$0xff]
    %v1195 = vld [vmem:[#allocation11 + $0x50] sm:$0xff]
    %v1196 = vld [vmem:[#allocation11 + $0x58] sm:$0xff]
    %v1197 = vld [vmem:[#allocation11 + $0x60] sm:$0xff]
    %v1198 = vld [vmem:[#allocation11 + $0x68] sm:$0xff]
    %v1199 = vld [vmem:[#allocation11 + $0x70] sm:$0xff]
    %v1200 = vld [vmem:[#allocation11 + $0x78] sm:$0xff]
    %v1201 = vld [vmem:[#allocation11 + $0x80] sm:$0xff]
    %v1202 = vld [vmem:[#allocation11 + $0x88] sm:$0xff]
    %v1203 = vld [vmem:[#allocation11 + $0x90] sm:$0xff]
    %v1204 = vld [vmem:[#allocation11 + $0x98] sm:$0xff]
    %v1205 = vld [vmem:[#allocation11 + $0xa0] sm:$0xff]
    %v1206 = vld [vmem:[#allocation11 + $0xa8] sm:$0xff]
    %v1207 = vld [vmem:[#allocation11 + $0xb0] sm:$0xff]
    %v1208 = vld [vmem:[#allocation11 + $0xb8] sm:$0xff]
    %v1209 = vld [vmem:[#allocation11 + $0xc0] sm:$0xff]
    %v1210 = vld [vmem:[#allocation11 + $0xc8] sm:$0xff]
    %v1211 = vld [vmem:[#allocation11 + $0xd0] sm:$0xff]
    %v1212 = vld [vmem:[#allocation11 + $0xd8] sm:$0xff]
    %v1213 = vld [vmem:[#allocation11 + $0xe0] sm:$0xff]
    %v1214 = vld [vmem:[#allocation11 + $0xe8] sm:$0xff]
    %v1215 = vld [vmem:[#allocation11 + $0xf0] sm:$0xff]
    %v1216 = vld [vmem:[#allocation11 + $0xf8] sm:$0xff]
    %v1217 = vld [vmem:[#allocation11 + $0x100] sm:$0xff]
    %v1218 = vld [vmem:[#allocation11 + $0x108] sm:$0xff]
    %v1219 = vld [vmem:[#allocation11 + $0x110] sm:$0xff]
    %v1220 = vld [vmem:[#allocation11 + $0x118] sm:$0xff]
    %v1221 = vld [vmem:[#allocation11 + $0x120] sm:$0xff]
    %v1222 = vld [vmem:[#allocation11 + $0x128] sm:$0xff]
    %v1223 = vld [vmem:[#allocation11 + $0x130] sm:$0xff]
    %v1224 = vld [vmem:[#allocation11 + $0x138] sm:$0xff]
    %v1225 = vld [vmem:[#allocation11 + $0x140] sm:$0xff]
    %v1226 = vld [vmem:[#allocation11 + $0x148] sm:$0xff]
    %v1227 = vld [vmem:[#allocation11 + $0x150] sm:$0xff]
    %v1228 = vld [vmem:[#allocation11 + $0x158] sm:$0xff]
    %v1229 = vld [vmem:[#allocation11 + $0x160] sm:$0xff]
    %v1230 = vld [vmem:[#allocation11 + $0x168] sm:$0xff]
    %v1231 = vld [vmem:[#allocation11 + $0x170] sm:$0xff]
    %v1232 = vld [vmem:[#allocation11 + $0x178] sm:$0xff]
    %1233 = vmatpush.msra.mxu0 %v1230
    %1234 = vmatpush.msra.mxu0 %v1227
    %1235 = vmatpush.msra.mxu0 %v1224
    %1236 = vmatpush.msra.mxu0 %v1221
    %1237 = vmatpush.msra.mxu0 %v1218
    %1238 = vmatpush.msra.mxu0 %v1215
    %1239 = vmatpush.msra.mxu0 %v1212
    %1240 = vmatpush.msra.mxu0 %v1209
    %1241 = vmatpush.msra.mxu0 %v1206
    %1242 = vmatpush.msra.mxu0 %v1203
    %1243 = vmatpush.msra.mxu0 %v1200
    %1244 = vmatpush.msra.mxu0 %v1197
    %1245 = vmatpush.msra.mxu0 %v1194
    %1246 = vmatpush.msra.mxu0 %v1191
    %1247 = vmatpush.msra.mxu0 %v1188
    %1248 = vmatpush.msra.mxu0 %v1185
    %1249 = vmatmul.f32.gmra.mxu0 %v1182
    %v1250 = vpop.f32.mrf.mxu0
    %v1251 = vadd.f32 0.0, %v1250
    %1252 = vdwg.mxu0
    %1253 = vmatpush.msra.mxu0 %v1231
    %1254 = vmatpush.msra.mxu0 %v1228
    %1255 = vmatpush.msra.mxu0 %v1225
    %1256 = vmatpush.msra.mxu0 %v1222
    %1257 = vmatpush.msra.mxu0 %v1219
    %1258 = vmatpush.msra.mxu0 %v1216
    %1259 = vmatpush.msra.mxu0 %v1213
    %1260 = vmatpush.msra.mxu0 %v1210
    %1261 = vmatpush.msra.mxu0 %v1207
    %1262 = vmatpush.msra.mxu0 %v1204
    %1263 = vmatpush.msra.mxu0 %v1201
    %1264 = vmatpush.msra.mxu0 %v1198
    %1265 = vmatpush.msra.mxu0 %v1195
    %1266 = vmatpush.msra.mxu0 %v1192
    %1267 = vmatpush.msra.mxu0 %v1189
    %1268 = vmatpush.msra.mxu0 %v1186
    %1269 = vmatmul.f32.gmra.mxu0 %v1182
    %v1270 = vpop.f32.mrf.mxu0
    %v1271 = vadd.f32 0.0, %v1270
    %1272 = vdwg.mxu0
    %1273 = vmatpush.msra.mxu0 %v1232
    %1274 = vmatpush.msra.mxu0 %v1229
    %1275 = vmatpush.msra.mxu0 %v1226
    %1276 = vmatpush.msra.mxu0 %v1223
    %1277 = vmatpush.msra.mxu0 %v1220
    %1278 = vmatpush.msra.mxu0 %v1217
    %1279 = vmatpush.msra.mxu0 %v1214
    %1280 = vmatpush.msra.mxu0 %v1211
    %1281 = vmatpush.msra.mxu0 %v1208
    %1282 = vmatpush.msra.mxu0 %v1205
    %1283 = vmatpush.msra.mxu0 %v1202
    %1284 = vmatpush.msra.mxu0 %v1199
    %1285 = vmatpush.msra.mxu0 %v1196
    %1286 = vmatpush.msra.mxu0 %v1193
    %1287 = vmatpush.msra.mxu0 %v1190
    %1288 = vmatpush.msra.mxu0 %v1187
    %1289 = vmatmul.f32.gmra.mxu0 %v1182
    %v1290 = vpop.f32.mrf.mxu0
    %v1291 = vadd.f32 0.0, %v1290
    %1292 = vdwg.mxu0
    %v1293 = vadd.f32 %v306, %v1251
    %v1294 = vxor.u32 %v1293, 2147483648
    %v1295 = vmul.f32 %v1294, 1.442695
    %v1296 = vpow.pop %v1295
    %v1297 = vadd.f32 %v1296, 1.0
    %v1298 = vrcp.pop %v1297
    %v1299 = vmul.f32 %v1297, %v1298
    %v1300 = vsub.f32 1.0, %v1299
    %v1301 = vmul.f32 %v1298, %v1300
    %v1302 = vadd.f32 %v1298, %v1301
    %vm1303 = vweird.f32 %v1297
    %vm1304 = vweird.f32 %v1298
    %vm1305 = vmor %vm1303, %vm1304
    %v1306 = vsel %vm1305, %v1298, %v1302
    %v1307 = vand.u32 2147483647, %v1297
    %vm1308 = vcmp.eq.f32.partialorder %v1307, 8.507059e+37
    %v1309 = vand.u32 %v1297, 2147483648
    %v1310 = vor.u32 1.1754944e-38, %v1309
    %v1311 = vsel %vm1308, %v1310, %v1306
    %v1312 = vmul.f32 1.0, %v1311
    %v1313 = vadd.f32 %v347, %v1271
    %v1314 = vxor.u32 %v1313, 2147483648
    %v1315 = vmul.f32 %v1314, 1.442695
    %v1316 = vpow.pop %v1315
    %v1317 = vadd.f32 %v1316, 1.0
    %v1318 = vrcp.pop %v1317
    %v1319 = vmul.f32 %v1317, %v1318
    %v1320 = vsub.f32 1.0, %v1319
    %v1321 = vmul.f32 %v1318, %v1320
    %v1322 = vadd.f32 %v1318, %v1321
    %vm1323 = vweird.f32 %v1317
    %vm1324 = vweird.f32 %v1318
    %vm1325 = vmor %vm1323, %vm1324
    %v1326 = vsel %vm1325, %v1318, %v1322
    %v1327 = vand.u32 2147483647, %v1317
    %vm1328 = vcmp.eq.f32.partialorder %v1327, 8.507059e+37
    %v1329 = vand.u32 %v1317, 2147483648
    %v1330 = vor.u32 1.1754944e-38, %v1329
    %v1331 = vsel %vm1328, %v1330, %v1326
    %v1332 = vmul.f32 1.0, %v1331
    %v1333 = vadd.f32 %v1291, %v398
    %v1334 = vmul.f32 %v1312, %v1333
    %v1335 = vadd.f32 %v388, %v1334
    %v1336 = vtanh.pop %v1335
    %v1337 = vsub.f32 %v1182, %v1336
    %v1338 = vmul.f32 %v1332, %v1337
    %v1339 = vadd.f32 %v1336, %v1338
    %s1340 = scalar_lea.vmem [#allocation2], 40
    %1341 = vst [vmem:[%s1340] sm:$0xff] %v1339
    %v1342 = vld [vmem:[#allocation11] sm:$0xff]
    %v1343 = vld [vmem:[#allocation11 + $0x8] sm:$0xff]
    %v1344 = vld [vmem:[#allocation11 + $0x10] sm:$0xff]
    %v1345 = vld [vmem:[#allocation11 + $0x18] sm:$0xff]
    %v1346 = vld [vmem:[#allocation11 + $0x20] sm:$0xff]
    %v1347 = vld [vmem:[#allocation11 + $0x28] sm:$0xff]
    %v1348 = vld [vmem:[#allocation11 + $0x30] sm:$0xff]
    %v1349 = vld [vmem:[#allocation11 + $0x38] sm:$0xff]
    %v1350 = vld [vmem:[#allocation11 + $0x40] sm:$0xff]
    %v1351 = vld [vmem:[#allocation11 + $0x48] sm:$0xff]
    %v1352 = vld [vmem:[#allocation11 + $0x50] sm:$0xff]
    %v1353 = vld [vmem:[#allocation11 + $0x58] sm:$0xff]
    %v1354 = vld [vmem:[#allocation11 + $0x60] sm:$0xff]
    %v1355 = vld [vmem:[#allocation11 + $0x68] sm:$0xff]
    %v1356 = vld [vmem:[#allocation11 + $0x70] sm:$0xff]
    %v1357 = vld [vmem:[#allocation11 + $0x78] sm:$0xff]
    %v1358 = vld [vmem:[#allocation11 + $0x80] sm:$0xff]
    %v1359 = vld [vmem:[#allocation11 + $0x88] sm:$0xff]
    %v1360 = vld [vmem:[#allocation11 + $0x90] sm:$0xff]
    %v1361 = vld [vmem:[#allocation11 + $0x98] sm:$0xff]
    %v1362 = vld [vmem:[#allocation11 + $0xa0] sm:$0xff]
    %v1363 = vld [vmem:[#allocation11 + $0xa8] sm:$0xff]
    %v1364 = vld [vmem:[#allocation11 + $0xb0] sm:$0xff]
    %v1365 = vld [vmem:[#allocation11 + $0xb8] sm:$0xff]
    %v1366 = vld [vmem:[#allocation11 + $0xc0] sm:$0xff]
    %v1367 = vld [vmem:[#allocation11 + $0xc8] sm:$0xff]
    %v1368 = vld [vmem:[#allocation11 + $0xd0] sm:$0xff]
    %v1369 = vld [vmem:[#allocation11 + $0xd8] sm:$0xff]
    %v1370 = vld [vmem:[#allocation11 + $0xe0] sm:$0xff]
    %v1371 = vld [vmem:[#allocation11 + $0xe8] sm:$0xff]
    %v1372 = vld [vmem:[#allocation11 + $0xf0] sm:$0xff]
    %v1373 = vld [vmem:[#allocation11 + $0xf8] sm:$0xff]
    %v1374 = vld [vmem:[#allocation11 + $0x100] sm:$0xff]
    %v1375 = vld [vmem:[#allocation11 + $0x108] sm:$0xff]
    %v1376 = vld [vmem:[#allocation11 + $0x110] sm:$0xff]
    %v1377 = vld [vmem:[#allocation11 + $0x118] sm:$0xff]
    %v1378 = vld [vmem:[#allocation11 + $0x120] sm:$0xff]
    %v1379 = vld [vmem:[#allocation11 + $0x128] sm:$0xff]
    %v1380 = vld [vmem:[#allocation11 + $0x130] sm:$0xff]
    %v1381 = vld [vmem:[#allocation11 + $0x138] sm:$0xff]
    %v1382 = vld [vmem:[#allocation11 + $0x140] sm:$0xff]
    %v1383 = vld [vmem:[#allocation11 + $0x148] sm:$0xff]
    %v1384 = vld [vmem:[#allocation11 + $0x150] sm:$0xff]
    %v1385 = vld [vmem:[#allocation11 + $0x158] sm:$0xff]
    %v1386 = vld [vmem:[#allocation11 + $0x160] sm:$0xff]
    %v1387 = vld [vmem:[#allocation11 + $0x168] sm:$0xff]
    %v1388 = vld [vmem:[#allocation11 + $0x170] sm:$0xff]
    %v1389 = vld [vmem:[#allocation11 + $0x178] sm:$0xff]
    %1390 = vmatpush.msra.mxu0 %v1387
    %1391 = vmatpush.msra.mxu0 %v1384
    %1392 = vmatpush.msra.mxu0 %v1381
    %1393 = vmatpush.msra.mxu0 %v1378
    %1394 = vmatpush.msra.mxu0 %v1375
    %1395 = vmatpush.msra.mxu0 %v1372
    %1396 = vmatpush.msra.mxu0 %v1369
    %1397 = vmatpush.msra.mxu0 %v1366
    %1398 = vmatpush.msra.mxu0 %v1363
    %1399 = vmatpush.msra.mxu0 %v1360
    %1400 = vmatpush.msra.mxu0 %v1357
    %1401 = vmatpush.msra.mxu0 %v1354
    %1402 = vmatpush.msra.mxu0 %v1351
    %1403 = vmatpush.msra.mxu0 %v1348
    %1404 = vmatpush.msra.mxu0 %v1345
    %1405 = vmatpush.msra.mxu0 %v1342
    %1406 = vmatmul.f32.gmra.mxu0 %v1339
    %v1407 = vpop.f32.mrf.mxu0
    %v1408 = vadd.f32 0.0, %v1407
    %1409 = vdwg.mxu0
    %1410 = vmatpush.msra.mxu0 %v1388
    %1411 = vmatpush.msra.mxu0 %v1385
    %1412 = vmatpush.msra.mxu0 %v1382
    %1413 = vmatpush.msra.mxu0 %v1379
    %1414 = vmatpush.msra.mxu0 %v1376
    %1415 = vmatpush.msra.mxu0 %v1373
    %1416 = vmatpush.msra.mxu0 %v1370
    %1417 = vmatpush.msra.mxu0 %v1367
    %1418 = vmatpush.msra.mxu0 %v1364
    %1419 = vmatpush.msra.mxu0 %v1361
    %1420 = vmatpush.msra.mxu0 %v1358
    %1421 = vmatpush.msra.mxu0 %v1355
    %1422 = vmatpush.msra.mxu0 %v1352
    %1423 = vmatpush.msra.mxu0 %v1349
    %1424 = vmatpush.msra.mxu0 %v1346
    %1425 = vmatpush.msra.mxu0 %v1343
    %1426 = vmatmul.f32.gmra.mxu0 %v1339
    %v1427 = vpop.f32.mrf.mxu0
    %v1428 = vadd.f32 0.0, %v1427
    %1429 = vdwg.mxu0
    %1430 = vmatpush.msra.mxu0 %v1389
    %1431 = vmatpush.msra.mxu0 %v1386
    %1432 = vmatpush.msra.mxu0 %v1383
    %1433 = vmatpush.msra.mxu0 %v1380
    %1434 = vmatpush.msra.mxu0 %v1377
    %1435 = vmatpush.msra.mxu0 %v1374
    %1436 = vmatpush.msra.mxu0 %v1371
    %1437 = vmatpush.msra.mxu0 %v1368
    %1438 = vmatpush.msra.mxu0 %v1365
    %1439 = vmatpush.msra.mxu0 %v1362
    %1440 = vmatpush.msra.mxu0 %v1359
    %1441 = vmatpush.msra.mxu0 %v1356
    %1442 = vmatpush.msra.mxu0 %v1353
    %1443 = vmatpush.msra.mxu0 %v1350
    %1444 = vmatpush.msra.mxu0 %v1347
    %1445 = vmatpush.msra.mxu0 %v1344
    %1446 = vmatmul.f32.gmra.mxu0 %v1339
    %v1447 = vpop.f32.mrf.mxu0
    %v1448 = vadd.f32 0.0, %v1447
    %1449 = vdwg.mxu0
    %v1450 = vadd.f32 %v309, %v1408
    %v1451 = vxor.u32 %v1450, 2147483648
    %v1452 = vmul.f32 %v1451, 1.442695
    %v1453 = vpow.pop %v1452
    %v1454 = vadd.f32 %v1453, 1.0
    %v1455 = vrcp.pop %v1454
    %v1456 = vmul.f32 %v1454, %v1455
    %v1457 = vsub.f32 1.0, %v1456
    %v1458 = vmul.f32 %v1455, %v1457
    %v1459 = vadd.f32 %v1455, %v1458
    %vm1460 = vweird.f32 %v1454
    %vm1461 = vweird.f32 %v1455
    %vm1462 = vmor %vm1460, %vm1461
    %v1463 = vsel %vm1462, %v1455, %v1459
    %v1464 = vand.u32 2147483647, %v1454
    %vm1465 = vcmp.eq.f32.partialorder %v1464, 8.507059e+37
    %v1466 = vand.u32 %v1454, 2147483648
    %v1467 = vor.u32 1.1754944e-38, %v1466
    %v1468 = vsel %vm1465, %v1467, %v1463
    %v1469 = vmul.f32 1.0, %v1468
    %v1470 = vadd.f32 %v350, %v1428
    %v1471 = vxor.u32 %v1470, 2147483648
    %v1472 = vmul.f32 %v1471, 1.442695
    %v1473 = vpow.pop %v1472
    %v1474 = vadd.f32 %v1473, 1.0
    %v1475 = vrcp.pop %v1474
    %v1476 = vmul.f32 %v1474, %v1475
    %v1477 = vsub.f32 1.0, %v1476
    %v1478 = vmul.f32 %v1475, %v1477
    %v1479 = vadd.f32 %v1475, %v1478
    %vm1480 = vweird.f32 %v1474
    %vm1481 = vweird.f32 %v1475
    %vm1482 = vmor %vm1480, %vm1481
    %v1483 = vsel %vm1482, %v1475, %v1479
    %v1484 = vand.u32 2147483647, %v1474
    %vm1485 = vcmp.eq.f32.partialorder %v1484, 8.507059e+37
    %v1486 = vand.u32 %v1474, 2147483648
    %v1487 = vor.u32 1.1754944e-38, %v1486
    %v1488 = vsel %vm1485, %v1487, %v1483
    %v1489 = vmul.f32 1.0, %v1488
    %v1490 = vadd.f32 %v1448, %v398
    %v1491 = vmul.f32 %v1469, %v1490
    %v1492 = vadd.f32 %v391, %v1491
    %v1493 = vtanh.pop %v1492
    %v1494 = vsub.f32 %v1339, %v1493
    %v1495 = vmul.f32 %v1489, %v1494
    %v1496 = vadd.f32 %v1493, %v1495
    %s1497 = scalar_lea.vmem [#allocation2], 48
    %1498 = vst [vmem:[%s1497] sm:$0xff] %v1496
    %v1499 = vld [vmem:[#allocation11] sm:$0xff]
    %v1500 = vld [vmem:[#allocation11 + $0x8] sm:$0xff]
    %v1501 = vld [vmem:[#allocation11 + $0x10] sm:$0xff]
    %v1502 = vld [vmem:[#allocation11 + $0x18] sm:$0xff]
    %v1503 = vld [vmem:[#allocation11 + $0x20] sm:$0xff]
    %v1504 = vld [vmem:[#allocation11 + $0x28] sm:$0xff]
    %v1505 = vld [vmem:[#allocation11 + $0x30] sm:$0xff]
    %v1506 = vld [vmem:[#allocation11 + $0x38] sm:$0xff]
    %v1507 = vld [vmem:[#allocation11 + $0x40] sm:$0xff]
    %v1508 = vld [vmem:[#allocation11 + $0x48] sm:$0xff]
    %v1509 = vld [vmem:[#allocation11 + $0x50] sm:$0xff]
    %v1510 = vld [vmem:[#allocation11 + $0x58] sm:$0xff]
    %v1511 = vld [vmem:[#allocation11 + $0x60] sm:$0xff]
    %v1512 = vld [vmem:[#allocation11 + $0x68] sm:$0xff]
    %v1513 = vld [vmem:[#allocation11 + $0x70] sm:$0xff]
    %v1514 = vld [vmem:[#allocation11 + $0x78] sm:$0xff]
    %v1515 = vld [vmem:[#allocation11 + $0x80] sm:$0xff]
    %v1516 = vld [vmem:[#allocation11 + $0x88] sm:$0xff]
    %v1517 = vld [vmem:[#allocation11 + $0x90] sm:$0xff]
    %v1518 = vld [vmem:[#allocation11 + $0x98] sm:$0xff]
    %v1519 = vld [vmem:[#allocation11 + $0xa0] sm:$0xff]
    %v1520 = vld [vmem:[#allocation11 + $0xa8] sm:$0xff]
    %v1521 = vld [vmem:[#allocation11 + $0xb0] sm:$0xff]
    %v1522 = vld [vmem:[#allocation11 + $0xb8] sm:$0xff]
    %v1523 = vld [vmem:[#allocation11 + $0xc0] sm:$0xff]
    %v1524 = vld [vmem:[#allocation11 + $0xc8] sm:$0xff]
    %v1525 = vld [vmem:[#allocation11 + $0xd0] sm:$0xff]
    %v1526 = vld [vmem:[#allocation11 + $0xd8] sm:$0xff]
    %v1527 = vld [vmem:[#allocation11 + $0xe0] sm:$0xff]
    %v1528 = vld [vmem:[#allocation11 + $0xe8] sm:$0xff]
    %v1529 = vld [vmem:[#allocation11 + $0xf0] sm:$0xff]
    %v1530 = vld [vmem:[#allocation11 + $0xf8] sm:$0xff]
    %v1531 = vld [vmem:[#allocation11 + $0x100] sm:$0xff]
    %v1532 = vld [vmem:[#allocation11 + $0x108] sm:$0xff]
    %v1533 = vld [vmem:[#allocation11 + $0x110] sm:$0xff]
    %v1534 = vld [vmem:[#allocation11 + $0x118] sm:$0xff]
    %v1535 = vld [vmem:[#allocation11 + $0x120] sm:$0xff]
    %v1536 = vld [vmem:[#allocation11 + $0x128] sm:$0xff]
    %v1537 = vld [vmem:[#allocation11 + $0x130] sm:$0xff]
    %v1538 = vld [vmem:[#allocation11 + $0x138] sm:$0xff]
    %v1539 = vld [vmem:[#allocation11 + $0x140] sm:$0xff]
    %v1540 = vld [vmem:[#allocation11 + $0x148] sm:$0xff]
    %v1541 = vld [vmem:[#allocation11 + $0x150] sm:$0xff]
    %v1542 = vld [vmem:[#allocation11 + $0x158] sm:$0xff]
    %v1543 = vld [vmem:[#allocation11 + $0x160] sm:$0xff]
    %v1544 = vld [vmem:[#allocation11 + $0x168] sm:$0xff]
    %v1545 = vld [vmem:[#allocation11 + $0x170] sm:$0xff]
    %v1546 = vld [vmem:[#allocation11 + $0x178] sm:$0xff]
    %1547 = vmatpush.msra.mxu0 %v1544
    %1548 = vmatpush.msra.mxu0 %v1541
    %1549 = vmatpush.msra.mxu0 %v1538
    %1550 = vmatpush.msra.mxu0 %v1535
    %1551 = vmatpush.msra.mxu0 %v1532
    %1552 = vmatpush.msra.mxu0 %v1529
    %1553 = vmatpush.msra.mxu0 %v1526
    %1554 = vmatpush.msra.mxu0 %v1523
    %1555 = vmatpush.msra.mxu0 %v1520
    %1556 = vmatpush.msra.mxu0 %v1517
    %1557 = vmatpush.msra.mxu0 %v1514
    %1558 = vmatpush.msra.mxu0 %v1511
    %1559 = vmatpush.msra.mxu0 %v1508
    %1560 = vmatpush.msra.mxu0 %v1505
    %1561 = vmatpush.msra.mxu0 %v1502
    %1562 = vmatpush.msra.mxu0 %v1499
    %1563 = vmatmul.f32.gmra.mxu0 %v1496
    %v1564 = vpop.f32.mrf.mxu0
    %v1565 = vadd.f32 0.0, %v1564
    %1566 = vdwg.mxu0
    %1567 = vmatpush.msra.mxu0 %v1545
    %1568 = vmatpush.msra.mxu0 %v1542
    %1569 = vmatpush.msra.mxu0 %v1539
    %1570 = vmatpush.msra.mxu0 %v1536
    %1571 = vmatpush.msra.mxu0 %v1533
    %1572 = vmatpush.msra.mxu0 %v1530
    %1573 = vmatpush.msra.mxu0 %v1527
    %1574 = vmatpush.msra.mxu0 %v1524
    %1575 = vmatpush.msra.mxu0 %v1521
    %1576 = vmatpush.msra.mxu0 %v1518
    %1577 = vmatpush.msra.mxu0 %v1515
    %1578 = vmatpush.msra.mxu0 %v1512
    %1579 = vmatpush.msra.mxu0 %v1509
    %1580 = vmatpush.msra.mxu0 %v1506
    %1581 = vmatpush.msra.mxu0 %v1503
    %1582 = vmatpush.msra.mxu0 %v1500
    %1583 = vmatmul.f32.gmra.mxu0 %v1496
    %v1584 = vpop.f32.mrf.mxu0
    %v1585 = vadd.f32 0.0, %v1584
    %1586 = vdwg.mxu0
    %1587 = vmatpush.msra.mxu0 %v1546
    %1588 = vmatpush.msra.mxu0 %v1543
    %1589 = vmatpush.msra.mxu0 %v1540
    %1590 = vmatpush.msra.mxu0 %v1537
    %1591 = vmatpush.msra.mxu0 %v1534
    %1592 = vmatpush.msra.mxu0 %v1531
    %1593 = vmatpush.msra.mxu0 %v1528
    %1594 = vmatpush.msra.mxu0 %v1525
    %1595 = vmatpush.msra.mxu0 %v1522
    %1596 = vmatpush.msra.mxu0 %v1519
    %1597 = vmatpush.msra.mxu0 %v1516
    %1598 = vmatpush.msra.mxu0 %v1513
    %1599 = vmatpush.msra.mxu0 %v1510
    %1600 = vmatpush.msra.mxu0 %v1507
    %1601 = vmatpush.msra.mxu0 %v1504
    %1602 = vmatpush.msra.mxu0 %v1501
    %1603 = vmatmul.f32.gmra.mxu0 %v1496
    %v1604 = vpop.f32.mrf.mxu0
    %v1605 = vadd.f32 0.0, %v1604
    %1606 = vdwg.mxu0
    %v1607 = vadd.f32 %v312, %v1565
    %v1608 = vxor.u32 %v1607, 2147483648
    %v1609 = vmul.f32 %v1608, 1.442695
    %v1610 = vpow.pop %v1609
    %v1611 = vadd.f32 %v1610, 1.0
    %v1612 = vrcp.pop %v1611
    %v1613 = vmul.f32 %v1611, %v1612
    %v1614 = vsub.f32 1.0, %v1613
    %v1615 = vmul.f32 %v1612, %v1614
    %v1616 = vadd.f32 %v1612, %v1615
    %vm1617 = vweird.f32 %v1611
    %vm1618 = vweird.f32 %v1612
    %vm1619 = vmor %vm1617, %vm1618
    %v1620 = vsel %vm1619, %v1612, %v1616
    %v1621 = vand.u32 2147483647, %v1611
    %vm1622 = vcmp.eq.f32.partialorder %v1621, 8.507059e+37
    %v1623 = vand.u32 %v1611, 2147483648
    %v1624 = vor.u32 1.1754944e-38, %v1623
    %v1625 = vsel %vm1622, %v1624, %v1620
    %v1626 = vmul.f32 1.0, %v1625
    %v1627 = vadd.f32 %v353, %v1585
    %v1628 = vxor.u32 %v1627, 2147483648
    %v1629 = vmul.f32 %v1628, 1.442695
    %v1630 = vpow.pop %v1629
    %v1631 = vadd.f32 %v1630, 1.0
    %v1632 = vrcp.pop %v1631
    %v1633 = vmul.f32 %v1631, %v1632
    %v1634 = vsub.f32 1.0, %v1633
    %v1635 = vmul.f32 %v1632, %v1634
    %v1636 = vadd.f32 %v1632, %v1635
    %vm1637 = vweird.f32 %v1631
    %vm1638 = vweird.f32 %v1632
    %vm1639 = vmor %vm1637, %vm1638
    %v1640 = vsel %vm1639, %v1632, %v1636
    %v1641 = vand.u32 2147483647, %v1631
    %vm1642 = vcmp.eq.f32.partialorder %v1641, 8.507059e+37
    %v1643 = vand.u32 %v1631, 2147483648
    %v1644 = vor.u32 1.1754944e-38, %v1643
    %v1645 = vsel %vm1642, %v1644, %v1640
    %v1646 = vmul.f32 1.0, %v1645
    %v1647 = vadd.f32 %v1605, %v398
    %v1648 = vmul.f32 %v1626, %v1647
    %v1649 = vadd.f32 %v394, %v1648
    %v1650 = vtanh.pop %v1649
    %v1651 = vsub.f32 %v1496, %v1650
    %v1652 = vmul.f32 %v1646, %v1651
    %v1653 = vadd.f32 %v1650, %v1652
    %s1654 = scalar_lea.vmem [#allocation2], 56
    %1655 = vst [vmem:[%s1654] sm:$0xff] %v1653
    %1656 = vst [vmem:[#allocation17] sm:$0xff] %v1653
    %v1657 = vld [vmem:[#allocation2] sm:$0xff]
    %v1658 = vld [vmem:[#allocation2 + $0x8] sm:$0xff]
    %v1659 = vld [vmem:[#allocation2 + $0x10] sm:$0xff]
    %v1660 = vld [vmem:[#allocation2 + $0x18] sm:$0xff]
    %v1661 = vld [vmem:[#allocation2 + $0x20] sm:$0xff]
    %v1662 = vld [vmem:[#allocation2 + $0x28] sm:$0xff]
    %v1663 = vld [vmem:[#allocation2 + $0x30] sm:$0xff]
    %v1664 = vld [vmem:[#allocation2 + $0x38] sm:$0xff]
    %v1665 = vld [vmem:[#allocation12] sm:$0xff]
    %v1666 = vld [vmem:[#allocation12 + $0x8] sm:$0xff]
    %v1667 = vld [vmem:[#allocation12 + $0x10] sm:$0xff]
    %v1668 = vld [vmem:[#allocation12 + $0x18] sm:$0xff]
    %v1669 = vld [vmem:[#allocation12 + $0x20] sm:$0xff]
    %v1670 = vld [vmem:[#allocation12 + $0x28] sm:$0xff]
    %v1671 = vld [vmem:[#allocation12 + $0x30] sm:$0xff]
    %v1672 = vld [vmem:[#allocation12 + $0x38] sm:$0xff]
    %v1673 = vld [vmem:[#allocation12 + $0x40] sm:$0xff]
    %v1674 = vld [vmem:[#allocation12 + $0x48] sm:$0xff]
    %v1675 = vld [vmem:[#allocation12 + $0x50] sm:$0xff]
    %v1676 = vld [vmem:[#allocation12 + $0x58] sm:$0xff]
    %v1677 = vld [vmem:[#allocation12 + $0x60] sm:$0xff]
    %v1678 = vld [vmem:[#allocation12 + $0x68] sm:$0xff]
    %v1679 = vld [vmem:[#allocation12 + $0x70] sm:$0xff]
    %v1680 = vld [vmem:[#allocation12 + $0x78] sm:$0xff]
    %v1681 = vld [vmem:[%s9] sm:$0x1]
    %v1683 = vperm.slane %v1681, 0
    %1685 = vmatpush.msra.mxu0 %v1680
    %1686 = vmatpush.msra.mxu0 %v1679
    %1687 = vmatpush.msra.mxu0 %v1678
    %1688 = vmatpush.msra.mxu0 %v1677
    %1689 = vmatpush.msra.mxu0 %v1676
    %1690 = vmatpush.msra.mxu0 %v1675
    %1691 = vmatpush.msra.mxu0 %v1674
    %1692 = vmatpush.msra.mxu0 %v1673
    %1693 = vmatpush.msra.mxu0 %v1672
    %1694 = vmatpush.msra.mxu0 %v1671
    %1695 = vmatpush.msra.mxu0 %v1670
    %1696 = vmatpush.msra.mxu0 %v1669
    %1697 = vmatpush.msra.mxu0 %v1668
    %1698 = vmatpush.msra.mxu0 %v1667
    %1699 = vmatpush.msra.mxu0 %v1666
    %1700 = vmatpush.msra.mxu0 %v1665
    %1701 = vmatmul.f32.gmra.mxu0 %v1657
    %v1702 = vpop.f32.mrf.mxu0
    %v1703 = vadd.f32 %v1683, %v1702
    %1704 = vmatmul.f32.gmra.mxu0 %v1658
    %v1705 = vpop.f32.mrf.mxu0
    %v1706 = vadd.f32 %v1683, %v1705
    %1707 = vmatmul.f32.gmra.mxu0 %v1659
    %v1708 = vpop.f32.mrf.mxu0
    %v1709 = vadd.f32 %v1683, %v1708
    %1710 = vmatmul.f32.gmra.mxu0 %v1660
    %v1711 = vpop.f32.mrf.mxu0
    %v1712 = vadd.f32 %v1683, %v1711
    %1713 = vmatmul.f32.gmra.mxu0 %v1661
    %v1714 = vpop.f32.mrf.mxu0
    %v1715 = vadd.f32 %v1683, %v1714
    %1716 = vmatmul.f32.gmra.mxu0 %v1662
    %v1717 = vpop.f32.mrf.mxu0
    %v1718 = vadd.f32 %v1683, %v1717
    %1719 = vmatmul.f32.gmra.mxu0 %v1663
    %v1720 = vpop.f32.mrf.mxu0
    %v1721 = vadd.f32 %v1683, %v1720
    %1722 = vmatmul.f32.gmra.mxu0 %v1664
    %v1723 = vpop.f32.mrf.mxu0
    %v1724 = vadd.f32 %v1683, %v1723
    %1725 = vdwg.mxu0
    %1726 = vst [vmem:[#allocation15] sm:$0xff] %v1703
    %1727 = vst [vmem:[#allocation15 + $0x8] sm:$0xff] %v1706
    %1728 = vst [vmem:[#allocation15 + $0x10] sm:$0xff] %v1709
    %1729 = vst [vmem:[#allocation15 + $0x18] sm:$0xff] %v1712
    %1730 = vst [vmem:[#allocation15 + $0x20] sm:$0xff] %v1715
    %1731 = vst [vmem:[#allocation15 + $0x28] sm:$0xff] %v1718
    %1732 = vst [vmem:[#allocation15 + $0x30] sm:$0xff] %v1721
    %1733 = vst [vmem:[#allocation15 + $0x38] sm:$0xff] %v1724
    // Predicated region
    $region66: #{tpu_custom_call.1} parent=1 // pred_check
      _
    $region67: #{tpu_custom_call.1} parent=1 // pred_check_branch
      %1735 = sbr.rel (0) target = $region69
    $region68: #{tpu_custom_call.1} parent=1 // pred_region
      %1737 = vsyncadd [#allocation5], 0
      %s1738 = sshll.u32 [#allocation14], 4
      %s1739 = int_to_ptr.vmem [resolvable:$true] %s1738
      %s1740 = sshll.u32 %s10, 4
      %s1741 = int_to_ptr.hbm [resolvable:$true] %s1740
      %1746 = dma.vmem_to_hbm [thread:$0]  %s1739, 1024, %s1741, [#allocation5], 128, 128, 8
    $region69: #{tpu_custom_call.1} parent=1 // pred_fallthru
      _
    // Predicated region
    $region70: #{tpu_custom_call.1} parent=1 // pred_check
      _
    $region71: #{tpu_custom_call.1} parent=1 // pred_check_branch
      %1748 = sbr.rel (0) target = $region73
    $region72: #{tpu_custom_call.1} parent=1 // pred_region
      %1750 = vsyncadd [#allocation16], 0
      %s1751 = sshll.u32 [#allocation15], 4
      %s1752 = int_to_ptr.vmem [resolvable:$true] %s1751
      %s1753 = sshll.u32 %s11, 4
      %s1754 = int_to_ptr.hbm [resolvable:$true] %s1753
      %1759 = dma.vmem_to_hbm [thread:$0]  %s1752, 1024, %s1754, [#allocation16], 128, 128, 8
    $region73: #{tpu_custom_call.1} parent=1 // pred_fallthru
      _
    // Predicated region
    $region74: #{tpu_custom_call.1} parent=1 // pred_check
      _
    $region75: #{tpu_custom_call.1} parent=1 // pred_check_branch
      %1761 = sbr.rel (0) target = $region77
    $region76: #{tpu_custom_call.1} parent=1 // pred_region
      %1763 = vsyncadd [#allocation16], 0
      %s1765 = sshll.u32 [#allocation17], 4
      %s1766 = int_to_ptr.vmem [resolvable:$true] %s1765
      %s1767 = sshll.u32 %s12, 4
      %s1768 = int_to_ptr.hbm [resolvable:$true] %s1767
      %1770 = dma.vmem_to_hbm [thread:$0]  %s1766, 128, %s1768, [#allocation16]
    $region77: #{tpu_custom_call.1} parent=1 // pred_fallthru
      _
    // Predicated region
    $region78: #{tpu_custom_call.1} parent=1 // pred_check
      _
    $region79: #{tpu_custom_call.1} parent=1 // pred_check_branch
      %1772 = sbr.rel (0) target = $region81
    $region80: #{tpu_custom_call.1} parent=1 // pred_region
      %1774 = dma.done [#allocation5], 1024
    $region81: #{tpu_custom_call.1} parent=1 // pred_fallthru
      _
    // Predicated region
    $region82: #{tpu_custom_call.1} parent=1 // pred_check
      _
    $region83: #{tpu_custom_call.1} parent=1 // pred_check_branch
      %1776 = sbr.rel (0) target = $region85
    $region84: #{tpu_custom_call.1} parent=1 // pred_region
      %1778 = dma.done [#allocation16], 1024
    $region85: #{tpu_custom_call.1} parent=1 // pred_fallthru
      _
    // Predicated region
    $region86: #{tpu_custom_call.1} parent=1 // pred_check
      _
    $region87: #{tpu_custom_call.1} parent=1 // pred_check_branch
      %1780 = sbr.rel (0) target = $region89
    $region88: #{tpu_custom_call.1} parent=1 // pred_region
      %1782 = dma.done [#allocation16], 128
    $region89: #{tpu_custom_call.1} parent=1 // pred_fallthru
      _
    %1783 = vsyncpa [#allocation4], 1
    %1784 = vsyncpa [#allocation7], 1
    %1785 = vsyncpa [#allocation10], 1
    %1786 = vsyncpa [#allocation13], 1
    %1787 = vsyncpa [#allocation5], 1
    %1788 = vsyncpa [#allocation16], 1

</llo_original>
